<compile_context>
chip_gen: v6e
topology: v6e:2x2x1
jax: 0.10.0
libtpu: 0.0.40
codegen_flags: <defaults>
</compile_context>

<pallas_src>
import numpy as np
import jax
import jax.numpy as jnp
from jax.experimental import pallas as pl
from jax.experimental.pallas import tpu as pltpu


# ----------------------------------------------------------------------------
# Fused Pallas kernel: all GATLayerImp3 layers (eval mode) in one pallas_call.
# ----------------------------------------------------------------------------
def _make_fused_gat2_kernel(metas):
    f32 = jnp.float32
    bf16 = jnp.bfloat16

    def kernel(*refs):
        o_ref = refs[-1]
        it = iter(refs[:-1])
        x_ref = next(it)      # (N, Din0) f32 node features
        eprob_ref = next(it)  # (E, 1)    f32 edge transition prob
        s_ref = next(it)      # (E, N)    bf16 one-hot of source node index
        t_ref = next(it)      # (E, N)    bf16 one-hot of target node index
        tt_ref = next(it)     # (N, E)    bf16 = T^T

        S = s_ref[...]
        T = t_ref[...]
        Tt = tt_ref[...]
        eprob = eprob_ref[...]
        feats = x_ref[...]                                   # stays in VMEM/vregs across layers

        for m in metas:
            H, F, HF = m['H'], m['F'], m['HF']
            # merged weight block: [W^T | 0_H | W^T @ a_trg | skip_proj^T-or-identity]
            wcat = next(it)[...]        # (Din, 2*HF + 2H)
            crow = next(it)[...]        # (1, HF+H)   zeros then ones
            asrc_pad = next(it)[...]    # (HF+H, H)   block-diag a_src, zero-padded
            hb_aug = next(it)[...]      # (H, HF+H)   = [head-broadcast | I_H]
            tp_row = next(it)[...]      # (1, H)
            bias = next(it)[...]        # (1, Dout)
            comb = next(it)[...] if not m['concat'] else None   # (HF, F) mean-over-heads

            # --- single merged projection matmul ---------------------------------
            big = jnp.dot(feats, wcat, preferred_element_type=f32)        # (N, 2HF+2H)
            proj_aug = big[:, :HF + H] + crow                             # (N, HF+H) = [proj | 1]
            s_trg = big[:, HF + H:HF + 2 * H]                             # (N, H)
            skip_term = big[:, HF + 2 * H:]                               # (N, HF)

            # --- lift (gather to edges) via bf16 one-hot matmuls -----------------
            proj_aug_l = jnp.dot(S, proj_aug.astype(bf16),
                                 preferred_element_type=f32)              # (E, HF+H)
            s_trg_l = jnp.dot(T, s_trg.astype(bf16),
                              preferred_element_type=f32)                 # (E, H)
            s_src_l = jnp.dot(proj_aug_l, asrc_pad,
                              preferred_element_type=f32)                 # (E, H)

            # --- per-edge scores, LeakyReLU(0.2), global-max stabilized exp ------
            scores = s_src_l + s_trg_l + eprob * tp_row                   # (E, H)
            scores = jnp.where(scores > 0, scores, 0.2 * scores)
            scores = scores - jnp.max(scores)
            exp_s = jnp.exp(scores)                                       # (E, H)

            # --- weight features; denominator rides along the same scatter ------
            att_aug = jnp.dot(exp_s, hb_aug, preferred_element_type=f32)  # (E, HF+H)
            weighted = proj_aug_l * att_aug                               # [exp*proj | exp]
            scat = jnp.dot(Tt, weighted.astype(bf16),
                           preferred_element_type=f32)                    # (N, HF+H)
            agg = scat[:, :HF]                                            # numerator  (N, HF)
            denom = scat[:, HF:]                                          # denominator(N, H)
            denom_full = jnp.dot(denom, hb_aug[:, :HF],
                                 preferred_element_type=f32) + 1e-16      # (N, HF)
            out = agg * pl.reciprocal(denom_full, approx=True)            # post-agg softmax

            # --- skip connection, concat/mean, bias, activation ------------------
            out = out + skip_term
            if not m['concat']:
                out = jnp.dot(out, comb, preferred_element_type=f32)      # mean over heads
            out = out + bias
            if m['apply_elu']:
                out = jnp.where(out > 0.0, out,
                                jnp.exp(jnp.minimum(out, 0.0)) - 1.0)     # overflow-safe ELU
            feats = out

        o_ref[...] = feats

    return kernel


# ----------------------------------------------------------------------------
# One-time precompute of all graph- and parameter-derived constants.
# ----------------------------------------------------------------------------
def precompute_gat2(edge_index, layer_params, layer_cfg, N):
    src, trg = edge_index[0], edge_index[1]
    S = jax.nn.one_hot(src, N, dtype=jnp.bfloat16)        # (E, N)
    T = jax.nn.one_hot(trg, N, dtype=jnp.bfloat16)        # (E, N)
    Tt = T.T                                              # (N, E)
    graph_consts = [S, T, Tt]

    metas, layer_consts = [], []
    for p, (concat, apply_elu) in zip(layer_params, layer_cfg):
        a_src = p['a_src']                                # (1, H, F)
        H, F = a_src.shape[1], a_src.shape[2]
        HF = H * F
        Wt = p['W'].T                                     # (Din, HF)
        Din = Wt.shape[0]

        eyeH = jnp.eye(H, dtype=jnp.float32)
        asrc_m = (a_src[0][:, :, None] * eyeH[:, None, :]).reshape(HF, H)
        atrg_m = (p['a_trg'][0][:, :, None] * eyeH[:, None, :]).reshape(HF, H)

        if F == Din:
            # skip connection is identity replication per head
            skip_m = jnp.tile(jnp.eye(F, dtype=jnp.float32), (1, H))          # (Din, HF)
        else:
            skip_m = p['Wskip'].T                                             # (Din, HF)

        wtrg = Wt @ atrg_m                                                    # (Din, H)
        # merged RHS: [W^T | 0_H | W^T @ a_trg | skip]  -> ONE projection matmul
        wcat = jnp.concatenate(
            [Wt, jnp.zeros((Din, H), jnp.float32), wtrg, skip_m], axis=1)     # (Din, 2HF+2H)
        crow = jnp.concatenate(
            [jnp.zeros((1, HF), jnp.float32), jnp.ones((1, H), jnp.float32)], axis=1)
        asrc_pad = jnp.concatenate(
            [asrc_m, jnp.zeros((H, H), jnp.float32)], axis=0)                 # (HF+H, H)

        hb = jnp.kron(jnp.eye(H, dtype=jnp.float32),
                      jnp.ones((1, F), jnp.float32))                          # (H, HF)
        hb_aug = jnp.concatenate([hb, jnp.eye(H, dtype=jnp.float32)], axis=1)  # (H, HF+H)

        # trans-prob scores collapse to one row: s_tp[e, h] = edge_prob[e] * tp_row[h]
        tp_row = (p['Wp'].reshape(H, F) * p['a_tp'][0]).sum(-1).reshape(1, H)

        Dout = HF if concat else F
        bias2d = p['bias'].reshape(1, Dout)

        consts = [wcat, crow, asrc_pad, hb_aug, tp_row, bias2d]
        if not concat:
            consts.append(jnp.tile(jnp.eye(F, dtype=jnp.float32), (H, 1)) / H)  # mean-over-heads
        layer_consts.extend(consts)
        metas.append(dict(H=H, F=F, HF=HF, concat=concat,
                          apply_elu=apply_elu, Dout=Dout))

    return graph_consts, layer_consts, metas


# ----------------------------------------------------------------------------
# GAT2 forward: one fused Pallas kernel + final (B, T) node-embedding lookup.
# ----------------------------------------------------------------------------
def gat2_forward(node_features, edge_prob, x, graph_consts, layer_consts, metas, d_model):
    N = node_features.shape[0]
    Dout = metas[-1]['Dout']
    inputs = [node_features, edge_prob] + list(graph_consts) + list(layer_consts)

    vmem_spec = lambda: pl.BlockSpec(memory_space=pltpu.MemorySpace.VMEM)
    feats = pl.pallas_call(
        _make_fused_gat2_kernel(metas),
        out_shape=jax.ShapeDtypeStruct((N, Dout), jnp.float32),
        in_specs=[vmem_spec() for _ in inputs],
        out_specs=vmem_spec(),
    )(*inputs)

    B, T_seq = x.shape
    # torch: expand to (B, N, d_model) -> reshape(-1, d_model) -> index with x ids,
    # which equals a plain row gather -- kept as plain-JAX glue.
    return feats[x.reshape(-1)].reshape(B, T_seq, d_model)


# ----------------------------------------------------------------------------
# Deterministic parameter init (xavier-uniform-like; bias zeros as in torch).
# ----------------------------------------------------------------------------
def _xavier(key, shape, fan_in, fan_out):
    bound = float(np.sqrt(6.0 / (fan_in + fan_out)))
    return jax.random.uniform(key, shape, jnp.float32, -bound, bound)


def init_layer_params(key, num_in, F, H, concat):
    HF = H * F
    ks = jax.random.split(key, 6)
    W = _xavier(ks[0], (HF, num_in), num_in, HF)      # linear_proj.weight
    Wp = _xavier(ks[1], (HF, 1), 1, HF)               # linear_proj_tran_prob.weight
    a_src = _xavier(ks[2], (1, H, F), HF, F)          # scoring_fn_source
    a_trg = _xavier(ks[3], (1, H, F), HF, F)          # scoring_fn_target
    a_tp = _xavier(ks[4], (1, H, F), HF, F)           # scoring_trans_prob
    Wskip = _xavier(ks[5], (HF, num_in), num_in, HF)  # skip_proj.weight
    bias = jnp.zeros((HF if concat else F,), jnp.float32)
    return dict(W=W, Wp=Wp, a_src=a_src, a_trg=a_trg, a_tp=a_tp,
                Wskip=Wskip, bias=bias)


# ----------------------------------------------------------------------------
# Pure-JAX reference (for correctness check of the Pallas kernel).
# ----------------------------------------------------------------------------
def gat_layer_ref(x_nodes, edge_index, edge_prob, p, concat, apply_elu):
    N = x_nodes.shape[0]
    H, F = p['a_src'].shape[1], p['a_src'].shape[2]
    proj = (x_nodes @ p['W'].T).reshape(N, H, F)
    tp = (edge_prob @ p['Wp'].T).reshape(-1, H, F)
    s_src = (proj * p['a_src']).sum(-1)
    s_trg = (proj * p['a_trg']).sum(-1)
    s_tp = (tp * p['a_tp']).sum(-1)
    src, trg = edge_index[0], edge_index[1]
    scores = s_src[src] + s_trg[trg] + s_tp
    scores = jnp.where(scores > 0, scores, 0.2 * scores)
    scores = scores - scores.max()
    e = jnp.exp(scores)
    denom = jax.ops.segment_sum(e, trg, num_segments=N)
    att = e / (denom[trg] + 1e-16)
    weighted = proj[src] * att[:, :, None]
    out = jax.ops.segment_sum(weighted, trg, num_segments=N)
    if F == x_nodes.shape[-1]:
        out = out + x_nodes[:, None, :]
    else:
        out = out + (x_nodes @ p['Wskip'].T).reshape(N, H, F)
    out = out.reshape(N, H * F) if concat else out.mean(axis=1)
    out = out + p['bias']
    if apply_elu:
        out = jnp.where(out > 0, out, jnp.expm1(out))
    return out


if __name__ == "__main__":
    # GAT2 config (small, consistent with module assertions; avg_last=True)
    d_model = 32
    in_feature = 16
    num_heads_per_layer = [2, 2]
    num_features_per_layer = [16, 32]
    avg_last = True

    N = 16            # vocab_size / number of graph nodes
    E = 48            # number of edges (includes self-loops)
    B, T_seq = 2, 8   # x: (B, T)

    feats_per_layer = [in_feature] + num_features_per_layer
    heads_per_layer = [1] + num_heads_per_layer
    n_layers = len(num_heads_per_layer)

    key = jax.random.PRNGKey(0)
    kk = jax.random.split(key, 5)
    node_features = jax.random.normal(kk[0], (N, in_feature), jnp.float32)
    self_loops = jnp.stack([jnp.arange(N, dtype=jnp.int32),
                            jnp.arange(N, dtype=jnp.int32)])
    rand_edges = jax.random.randint(kk[1], (2, E - N), 0, N, dtype=jnp.int32)
    edge_index = jnp.concatenate([self_loops, rand_edges], axis=1)       # (2, E)
    edge_prob = jax.random.uniform(kk[2], (E, 1), jnp.float32)           # (E, 1)
    x = jax.random.randint(kk[3], (B, T_seq), 0, N, dtype=jnp.int32)     # (B, T)

    layer_params, layer_cfg = [], []
    pkeys = jax.random.split(kk[4], n_layers)
    for i in range(n_layers):
        num_in = feats_per_layer[i] * heads_per_layer[i]
        F_out = feats_per_layer[i + 1]
        H = heads_per_layer[i + 1]
        concat = True if i < n_layers - 1 else (not avg_last)
        apply_elu = i < n_layers - 1            # ELU except for last layer (None)
        layer_params.append(init_layer_params(pkeys[i], num_in, F_out, H, concat))
        layer_cfg.append((concat, apply_elu))

    # one-time constant precompute (graph + parameter derived), reused per forward
    graph_consts, layer_consts, metas = precompute_gat2(edge_index, layer_params,
                                                        layer_cfg, N)

    out = gat2_forward(node_features, edge_prob, x,
                       graph_consts, layer_consts, metas, d_model)
    out = jax.block_until_ready(out)
    assert out.shape == (B, T_seq, d_model)

    # reference check
    ref_feats = node_features
    for p, (concat, apply_elu) in zip(layer_params, layer_cfg):
        ref_feats = gat_layer_ref(ref_feats, edge_index, edge_prob, p,
                                  concat, apply_elu)
    ref_out = ref_feats[x.reshape(-1)].reshape(B, T_seq, d_model)
    np.testing.assert_allclose(np.asarray(out), np.asarray(ref_out),
                               rtol=5e-2, atol=5e-2)

    print("KERNEL_OK")
</pallas_src>

<mosaic_0001>
module attributes {stable_mosaic.version = 11 : i64} {
  func.func @kernel(%arg0: memref<16x16xf32, #tpu.memory_space<vmem>>, %arg1: memref<48x1xf32, #tpu.memory_space<vmem>>, %arg2: memref<48x16xbf16, #tpu.memory_space<vmem>>, %arg3: memref<48x16xbf16, #tpu.memory_space<vmem>>, %arg4: memref<16x48xbf16, #tpu.memory_space<vmem>>, %arg5: memref<16x68xf32, #tpu.memory_space<vmem>>, %arg6: memref<1x34xf32, #tpu.memory_space<vmem>>, %arg7: memref<34x2xf32, #tpu.memory_space<vmem>>, %arg8: memref<2x34xf32, #tpu.memory_space<vmem>>, %arg9: memref<1x2xf32, #tpu.memory_space<vmem>>, %arg10: memref<1x32xf32, #tpu.memory_space<vmem>>, %arg11: memref<32x132xf32, #tpu.memory_space<vmem>>, %arg12: memref<1x66xf32, #tpu.memory_space<vmem>>, %arg13: memref<66x2xf32, #tpu.memory_space<vmem>>, %arg14: memref<2x66xf32, #tpu.memory_space<vmem>>, %arg15: memref<1x2xf32, #tpu.memory_space<vmem>>, %arg16: memref<1x32xf32, #tpu.memory_space<vmem>>, %arg17: memref<64x32xf32, #tpu.memory_space<vmem>>, %arg18: memref<16x32xf32, #tpu.memory_space<vmem>>) attributes {dimension_semantics = [], scalar_prefetch = 0 : i64, scratch_operands = 0 : i64, tpu.core_type = #tpu.core_type<tc>} {
    %c0 = arith.constant 0 : index
    %c0_0 = arith.constant 0 : index
    %0 = vector.load %arg2[%c0, %c0_0] : memref<48x16xbf16, #tpu.memory_space<vmem>>, vector<48x16xbf16>
    %c0_1 = arith.constant 0 : index
    %c0_2 = arith.constant 0 : index
    %1 = vector.load %arg3[%c0_1, %c0_2] : memref<48x16xbf16, #tpu.memory_space<vmem>>, vector<48x16xbf16>
    %c0_3 = arith.constant 0 : index
    %c0_4 = arith.constant 0 : index
    %2 = vector.load %arg4[%c0_3, %c0_4] : memref<16x48xbf16, #tpu.memory_space<vmem>>, vector<16x48xbf16>
    %c0_5 = arith.constant 0 : index
    %c0_6 = arith.constant 0 : index
    %3 = vector.load %arg1[%c0_5, %c0_6] : memref<48x1xf32, #tpu.memory_space<vmem>>, vector<48x1xf32>
    %c0_7 = arith.constant 0 : index
    %c0_8 = arith.constant 0 : index
    %4 = vector.load %arg0[%c0_7, %c0_8] : memref<16x16xf32, #tpu.memory_space<vmem>>, vector<16x16xf32>
    %c0_9 = arith.constant 0 : index
    %c0_10 = arith.constant 0 : index
    %5 = vector.load %arg5[%c0_9, %c0_10] : memref<16x68xf32, #tpu.memory_space<vmem>>, vector<16x68xf32>
    %c0_11 = arith.constant 0 : index
    %c0_12 = arith.constant 0 : index
    %6 = vector.load %arg6[%c0_11, %c0_12] : memref<1x34xf32, #tpu.memory_space<vmem>>, vector<1x34xf32>
    %c0_13 = arith.constant 0 : index
    %c0_14 = arith.constant 0 : index
    %7 = vector.load %arg7[%c0_13, %c0_14] : memref<34x2xf32, #tpu.memory_space<vmem>>, vector<34x2xf32>
    %c0_15 = arith.constant 0 : index
    %c0_16 = arith.constant 0 : index
    %8 = vector.load %arg8[%c0_15, %c0_16] : memref<2x34xf32, #tpu.memory_space<vmem>>, vector<2x34xf32>
    %c0_17 = arith.constant 0 : index
    %c0_18 = arith.constant 0 : index
    %9 = vector.load %arg9[%c0_17, %c0_18] : memref<1x2xf32, #tpu.memory_space<vmem>>, vector<1x2xf32>
    %c0_19 = arith.constant 0 : index
    %c0_20 = arith.constant 0 : index
    %10 = vector.load %arg10[%c0_19, %c0_20] : memref<1x32xf32, #tpu.memory_space<vmem>>, vector<1x32xf32>
    %cst = arith.constant dense<0.000000e+00> : vector<16x68xf32>
    %11 = tpu.matmul %4, %5, %cst {dimension_numbers = #tpu.dot_dimension_numbers<[1], [0], [0], [1], [0, 0, 1, 1], [], []>} : vector<16x16xf32>, vector<16x68xf32>, vector<16x68xf32> -> vector<16x68xf32>
    %12 = vector.extract_strided_slice %11 {offsets = [0, 0], sizes = [16, 34], strides = [1, 1]} : vector<16x68xf32> to vector<16x34xf32>
    %13 = vector.broadcast %6 : vector<1x34xf32> to vector<16x34xf32>
    %14 = arith.addf %12, %13 : vector<16x34xf32>
    %15 = vector.extract_strided_slice %11 {offsets = [0, 34], sizes = [16, 2], strides = [1, 1]} : vector<16x68xf32> to vector<16x2xf32>
    %16 = vector.extract_strided_slice %11 {offsets = [0, 36], sizes = [16, 32], strides = [1, 1]} : vector<16x68xf32> to vector<16x32xf32>
    %17 = arith.truncf %14 : vector<16x34xf32> to vector<16x34xbf16>
    %cst_21 = arith.constant dense<0.000000e+00> : vector<48x34xf32>
    %18 = tpu.matmul %0, %17, %cst_21 {dimension_numbers = #tpu.dot_dimension_numbers<[1], [0], [0], [1], [0, 0, 1, 1], [], []>} : vector<48x16xbf16>, vector<16x34xbf16>, vector<48x34xf32> -> vector<48x34xf32>
    %19 = arith.truncf %15 : vector<16x2xf32> to vector<16x2xbf16>
    %cst_22 = arith.constant dense<0.000000e+00> : vector<48x2xf32>
    %20 = tpu.matmul %1, %19, %cst_22 {dimension_numbers = #tpu.dot_dimension_numbers<[1], [0], [0], [1], [0, 0, 1, 1], [], []>} : vector<48x16xbf16>, vector<16x2xbf16>, vector<48x2xf32> -> vector<48x2xf32>
    %cst_23 = arith.constant dense<0.000000e+00> : vector<48x2xf32>
    %21 = tpu.matmul %18, %7, %cst_23 {dimension_numbers = #tpu.dot_dimension_numbers<[1], [0], [0], [1], [0, 0, 1, 1], [], []>} : vector<48x34xf32>, vector<34x2xf32>, vector<48x2xf32> -> vector<48x2xf32>
    %22 = arith.addf %21, %20 : vector<48x2xf32>
    %23 = vector.broadcast %3 : vector<48x1xf32> to vector<48x2xf32>
    %24 = vector.broadcast %9 : vector<1x2xf32> to vector<48x2xf32>
    %25 = arith.mulf %23, %24 : vector<48x2xf32>
    %26 = arith.addf %22, %25 : vector<48x2xf32>
    %cst_24 = arith.constant 0.000000e+00 : f32
    %27 = vector.broadcast %cst_24 : f32 to vector<48x2xf32>
    %28 = arith.cmpf ogt, %26, %27 : vector<48x2xf32>
    %cst_25 = arith.constant 2.000000e-01 : f32
    %29 = vector.broadcast %cst_25 : f32 to vector<48x2xf32>
    %30 = arith.mulf %29, %26 : vector<48x2xf32>
    %31 = arith.select %28, %26, %30 : vector<48x2xi1>, vector<48x2xf32>
    %32 = vector.shape_cast %31 : vector<48x2xf32> to vector<1x48x2xf32>
    %cst_26 = arith.constant dense<0xFF800000> : vector<1xf32>
    %33 = vector.multi_reduction <maximumf>, %32, %cst_26 [1, 2] : vector<1x48x2xf32> to vector<1xf32>
    %34 = vector.shape_cast %33 : vector<1xf32> to vector<1x1x1xf32>
    %35 = vector.extract %34[0, 0, 0] : f32 from vector<1x1x1xf32>
    %36 = vector.broadcast %35 : f32 to vector<48x2xf32>
    %37 = arith.subf %31, %36 : vector<48x2xf32>
    %38 = math.exp %37 : vector<48x2xf32>
    %cst_27 = arith.constant dense<0.000000e+00> : vector<48x34xf32>
    %39 = tpu.matmul %38, %8, %cst_27 {dimension_numbers = #tpu.dot_dimension_numbers<[1], [0], [0], [1], [0, 0, 1, 1], [], []>} : vector<48x2xf32>, vector<2x34xf32>, vector<48x34xf32> -> vector<48x34xf32>
    %40 = arith.mulf %18, %39 : vector<48x34xf32>
    %41 = arith.truncf %40 : vector<48x34xf32> to vector<48x34xbf16>
    %cst_28 = arith.constant dense<0.000000e+00> : vector<16x34xf32>
    %42 = tpu.matmul %2, %41, %cst_28 {dimension_numbers = #tpu.dot_dimension_numbers<[1], [0], [0], [1], [0, 0, 1, 1], [], []>} : vector<16x48xbf16>, vector<48x34xbf16>, vector<16x34xf32> -> vector<16x34xf32>
    %43 = vector.extract_strided_slice %42 {offsets = [0, 0], sizes = [16, 32], strides = [1, 1]} : vector<16x34xf32> to vector<16x32xf32>
    %44 = vector.extract_strided_slice %42 {offsets = [0, 32], sizes = [16, 2], strides = [1, 1]} : vector<16x34xf32> to vector<16x2xf32>
    %45 = vector.extract_strided_slice %8 {offsets = [0, 0], sizes = [2, 32], strides = [1, 1]} : vector<2x34xf32> to vector<2x32xf32>
    %cst_29 = arith.constant dense<0.000000e+00> : vector<16x32xf32>
    %46 = tpu.matmul %44, %45, %cst_29 {dimension_numbers = #tpu.dot_dimension_numbers<[1], [0], [0], [1], [0, 0, 1, 1], [], []>} : vector<16x2xf32>, vector<2x32xf32>, vector<16x32xf32> -> vector<16x32xf32>
    %cst_30 = arith.constant 1.000000e-16 : f32
    %47 = vector.broadcast %cst_30 : f32 to vector<16x32xf32>
    %48 = arith.addf %46, %47 : vector<16x32xf32>
    %49 = tpu.reciprocal %48 {approx = true} : vector<16x32xf32> -> vector<16x32xf32>
    %50 = arith.mulf %43, %49 : vector<16x32xf32>
    %51 = arith.addf %50, %16 : vector<16x32xf32>
    %52 = vector.broadcast %10 : vector<1x32xf32> to vector<16x32xf32>
    %53 = arith.addf %51, %52 : vector<16x32xf32>
    %cst_31 = arith.constant 0.000000e+00 : f32
    %54 = vector.broadcast %cst_31 : f32 to vector<16x32xf32>
    %55 = arith.cmpf ogt, %53, %54 : vector<16x32xf32>
    %cst_32 = arith.constant 0.000000e+00 : f32
    %56 = vector.broadcast %cst_32 : f32 to vector<16x32xf32>
    %57 = arith.minimumf %53, %56 : vector<16x32xf32>
    %58 = math.exp %57 : vector<16x32xf32>
    %cst_33 = arith.constant 1.000000e+00 : f32
    %59 = vector.broadcast %cst_33 : f32 to vector<16x32xf32>
    %60 = arith.subf %58, %59 : vector<16x32xf32>
    %61 = arith.select %55, %53, %60 : vector<16x32xi1>, vector<16x32xf32>
    %c0_34 = arith.constant 0 : index
    %c0_35 = arith.constant 0 : index
    %62 = vector.load %arg11[%c0_34, %c0_35] : memref<32x132xf32, #tpu.memory_space<vmem>>, vector<32x132xf32>
    %c0_36 = arith.constant 0 : index
    %c0_37 = arith.constant 0 : index
    %63 = vector.load %arg12[%c0_36, %c0_37] : memref<1x66xf32, #tpu.memory_space<vmem>>, vector<1x66xf32>
    %c0_38 = arith.constant 0 : index
    %c0_39 = arith.constant 0 : index
    %64 = vector.load %arg13[%c0_38, %c0_39] : memref<66x2xf32, #tpu.memory_space<vmem>>, vector<66x2xf32>
    %c0_40 = arith.constant 0 : index
    %c0_41 = arith.constant 0 : index
    %65 = vector.load %arg14[%c0_40, %c0_41] : memref<2x66xf32, #tpu.memory_space<vmem>>, vector<2x66xf32>
    %c0_42 = arith.constant 0 : index
    %c0_43 = arith.constant 0 : index
    %66 = vector.load %arg15[%c0_42, %c0_43] : memref<1x2xf32, #tpu.memory_space<vmem>>, vector<1x2xf32>
    %c0_44 = arith.constant 0 : index
    %c0_45 = arith.constant 0 : index
    %67 = vector.load %arg16[%c0_44, %c0_45] : memref<1x32xf32, #tpu.memory_space<vmem>>, vector<1x32xf32>
    %c0_46 = arith.constant 0 : index
    %c0_47 = arith.constant 0 : index
    %68 = vector.load %arg17[%c0_46, %c0_47] : memref<64x32xf32, #tpu.memory_space<vmem>>, vector<64x32xf32>
    %cst_48 = arith.constant dense<0.000000e+00> : vector<16x132xf32>
    %69 = tpu.matmul %61, %62, %cst_48 {dimension_numbers = #tpu.dot_dimension_numbers<[1], [0], [0], [1], [0, 0, 1, 1], [], []>} : vector<16x32xf32>, vector<32x132xf32>, vector<16x132xf32> -> vector<16x132xf32>
    %70 = vector.extract_strided_slice %69 {offsets = [0, 0], sizes = [16, 66], strides = [1, 1]} : vector<16x132xf32> to vector<16x66xf32>
    %71 = vector.broadcast %63 : vector<1x66xf32> to vector<16x66xf32>
    %72 = arith.addf %70, %71 : vector<16x66xf32>
    %73 = vector.extract_strided_slice %69 {offsets = [0, 66], sizes = [16, 2], strides = [1, 1]} : vector<16x132xf32> to vector<16x2xf32>
    %74 = vector.extract_strided_slice %69 {offsets = [0, 68], sizes = [16, 64], strides = [1, 1]} : vector<16x132xf32> to vector<16x64xf32>
    %75 = arith.truncf %72 : vector<16x66xf32> to vector<16x66xbf16>
    %cst_49 = arith.constant dense<0.000000e+00> : vector<48x66xf32>
    %76 = tpu.matmul %0, %75, %cst_49 {dimension_numbers = #tpu.dot_dimension_numbers<[1], [0], [0], [1], [0, 0, 1, 1], [], []>} : vector<48x16xbf16>, vector<16x66xbf16>, vector<48x66xf32> -> vector<48x66xf32>
    %77 = arith.truncf %73 : vector<16x2xf32> to vector<16x2xbf16>
    %cst_50 = arith.constant dense<0.000000e+00> : vector<48x2xf32>
    %78 = tpu.matmul %1, %77, %cst_50 {dimension_numbers = #tpu.dot_dimension_numbers<[1], [0], [0], [1], [0, 0, 1, 1], [], []>} : vector<48x16xbf16>, vector<16x2xbf16>, vector<48x2xf32> -> vector<48x2xf32>
    %cst_51 = arith.constant dense<0.000000e+00> : vector<48x2xf32>
    %79 = tpu.matmul %76, %64, %cst_51 {dimension_numbers = #tpu.dot_dimension_numbers<[1], [0], [0], [1], [0, 0, 1, 1], [], []>} : vector<48x66xf32>, vector<66x2xf32>, vector<48x2xf32> -> vector<48x2xf32>
    %80 = arith.addf %79, %78 : vector<48x2xf32>
    %81 = vector.broadcast %3 : vector<48x1xf32> to vector<48x2xf32>
    %82 = vector.broadcast %66 : vector<1x2xf32> to vector<48x2xf32>
    %83 = arith.mulf %81, %82 : vector<48x2xf32>
    %84 = arith.addf %80, %83 : vector<48x2xf32>
    %cst_52 = arith.constant 0.000000e+00 : f32
    %85 = vector.broadcast %cst_52 : f32 to vector<48x2xf32>
    %86 = arith.cmpf ogt, %84, %85 : vector<48x2xf32>
    %cst_53 = arith.constant 2.000000e-01 : f32
    %87 = vector.broadcast %cst_53 : f32 to vector<48x2xf32>
    %88 = arith.mulf %87, %84 : vector<48x2xf32>
    %89 = arith.select %86, %84, %88 : vector<48x2xi1>, vector<48x2xf32>
    %90 = vector.shape_cast %89 : vector<48x2xf32> to vector<1x48x2xf32>
    %cst_54 = arith.constant dense<0xFF800000> : vector<1xf32>
    %91 = vector.multi_reduction <maximumf>, %90, %cst_54 [1, 2] : vector<1x48x2xf32> to vector<1xf32>
    %92 = vector.shape_cast %91 : vector<1xf32> to vector<1x1x1xf32>
    %93 = vector.extract %92[0, 0, 0] : f32 from vector<1x1x1xf32>
    %94 = vector.broadcast %93 : f32 to vector<48x2xf32>
    %95 = arith.subf %89, %94 : vector<48x2xf32>
    %96 = math.exp %95 : vector<48x2xf32>
    %cst_55 = arith.constant dense<0.000000e+00> : vector<48x66xf32>
    %97 = tpu.matmul %96, %65, %cst_55 {dimension_numbers = #tpu.dot_dimension_numbers<[1], [0], [0], [1], [0, 0, 1, 1], [], []>} : vector<48x2xf32>, vector<2x66xf32>, vector<48x66xf32> -> vector<48x66xf32>
    %98 = arith.mulf %76, %97 : vector<48x66xf32>
    %99 = arith.truncf %98 : vector<48x66xf32> to vector<48x66xbf16>
    %cst_56 = arith.constant dense<0.000000e+00> : vector<16x66xf32>
    %100 = tpu.matmul %2, %99, %cst_56 {dimension_numbers = #tpu.dot_dimension_numbers<[1], [0], [0], [1], [0, 0, 1, 1], [], []>} : vector<16x48xbf16>, vector<48x66xbf16>, vector<16x66xf32> -> vector<16x66xf32>
    %101 = vector.extract_strided_slice %100 {offsets = [0, 0], sizes = [16, 64], strides = [1, 1]} : vector<16x66xf32> to vector<16x64xf32>
    %102 = vector.extract_strided_slice %100 {offsets = [0, 64], sizes = [16, 2], strides = [1, 1]} : vector<16x66xf32> to vector<16x2xf32>
    %103 = vector.extract_strided_slice %65 {offsets = [0, 0], sizes = [2, 64], strides = [1, 1]} : vector<2x66xf32> to vector<2x64xf32>
    %cst_57 = arith.constant dense<0.000000e+00> : vector<16x64xf32>
    %104 = tpu.matmul %102, %103, %cst_57 {dimension_numbers = #tpu.dot_dimension_numbers<[1], [0], [0], [1], [0, 0, 1, 1], [], []>} : vector<16x2xf32>, vector<2x64xf32>, vector<16x64xf32> -> vector<16x64xf32>
    %cst_58 = arith.constant 1.000000e-16 : f32
    %105 = vector.broadcast %cst_58 : f32 to vector<16x64xf32>
    %106 = arith.addf %104, %105 : vector<16x64xf32>
    %107 = tpu.reciprocal %106 {approx = true} : vector<16x64xf32> -> vector<16x64xf32>
    %108 = arith.mulf %101, %107 : vector<16x64xf32>
    %109 = arith.addf %108, %74 : vector<16x64xf32>
    %cst_59 = arith.constant dense<0.000000e+00> : vector<16x32xf32>
    %110 = tpu.matmul %109, %68, %cst_59 {dimension_numbers = #tpu.dot_dimension_numbers<[1], [0], [0], [1], [0, 0, 1, 1], [], []>} : vector<16x64xf32>, vector<64x32xf32>, vector<16x32xf32> -> vector<16x32xf32>
    %111 = vector.broadcast %67 : vector<1x32xf32> to vector<16x32xf32>
    %112 = arith.addf %110, %111 : vector<16x32xf32>
    %c0_60 = arith.constant 0 : index
    %c0_61 = arith.constant 0 : index
    %113 = vector.load %arg18[%c0_60, %c0_61] : memref<16x32xf32, #tpu.memory_space<vmem>>, vector<16x32xf32>
    tpu.vector_store %arg18[%c0_60, %c0_61], %112 {strides = array<i32>} : memref<16x32xf32, #tpu.memory_space<vmem>>, vector<16x32xf32>,
    return
  }
}

</mosaic_0001>

<llo_original>
// kernel: tpu_custom_call.1
$region0: #{tpu_custom_call.1}
  #allocation0 [shape = 'u32[]', space=smem, size = 0x4, offset = 0x4, fixed_abs, tag = 'smem constant byte address 0x4 - core index']
  #allocation1 [shape = 'u32[144,128]{1,0:T(1,128)}', space=vmem, size = 0x12000, scoped, tag = 'internal scratch']
  %s0 = inlined_call_operand.vmem [shape: f32[16,16], index: 0, kind: input, shape index: {}]
  %s1 = inlined_call_operand.vmem [shape: f32[48,1], index: 1, kind: input, shape index: {}]
  %s2 = inlined_call_operand.vmem [shape: bf16[48,16], index: 2, kind: input, shape index: {}]
  %s3 = inlined_call_operand.vmem [shape: bf16[48,16], index: 3, kind: input, shape index: {}]
  %s4 = inlined_call_operand.vmem [shape: bf16[16,48], index: 4, kind: input, shape index: {}]
  %s5 = inlined_call_operand.vmem [shape: f32[16,68], index: 5, kind: input, shape index: {}]
  %s6 = inlined_call_operand.vmem [shape: f32[1,34], index: 6, kind: input, shape index: {}]
  %s7 = inlined_call_operand.vmem [shape: f32[34,2], index: 7, kind: input, shape index: {}]
  %s8 = inlined_call_operand.vmem [shape: f32[2,34], index: 8, kind: input, shape index: {}]
  %s9 = inlined_call_operand.vmem [shape: f32[1,2], index: 9, kind: input, shape index: {}]
  %s10 = inlined_call_operand.vmem [shape: f32[1,32], index: 10, kind: input, shape index: {}]
  %s11 = inlined_call_operand.vmem [shape: f32[32,132], index: 11, kind: input, shape index: {}]
  %s12 = inlined_call_operand.vmem [shape: f32[1,66], index: 12, kind: input, shape index: {}]
  %s13 = inlined_call_operand.vmem [shape: f32[66,2], index: 13, kind: input, shape index: {}]
  %s14 = inlined_call_operand.vmem [shape: f32[2,66], index: 14, kind: input, shape index: {}]
  %s15 = inlined_call_operand.vmem [shape: f32[1,2], index: 15, kind: input, shape index: {}]
  %s16 = inlined_call_operand.vmem [shape: f32[1,32], index: 16, kind: input, shape index: {}]
  %s17 = inlined_call_operand.vmem [shape: f32[64,32], index: 17, kind: input, shape index: {}]
  %s18 = inlined_call_operand.hbm [shape: f32[16,32], index: 18, kind: output, shape index: {}]
  %s19 = sld [smem:[#allocation0]]
  $region82: #{tpu_custom_call.1} parent=0
    _
  %s21 = ssub.s32 1, %s19
  %s22 = scalar_select 0, %s21, %s19
  $region1: #{tpu_custom_call.1} parent=0
    #allocation2 [shape = 'u8[8192]{0}', space=vmem, size = 0x2000, scoped, tag = 'output window, operand 0, single buffered']
    #allocation3 [shape = 's32[1]{0}', space=sflag, size = 0x4, scoped, tag = 'scoped memory for tpu_custom_call.1']
    %23 = vsyncpa [#allocation3], 0
    // Predicated region
    $region2: #{tpu_custom_call.1} parent=1 // pred_check
      _
    $region3: #{tpu_custom_call.1} parent=1 // pred_check_branch
      %25 = sbr.rel (0) target = $region5
    $region4: #{tpu_custom_call.1} parent=1 // pred_region
      _
    $region5: #{tpu_custom_call.1} parent=1 // pred_fallthru
      _
    // Predicated region
    $region6: #{tpu_custom_call.1} parent=1 // pred_check
      _
    $region7: #{tpu_custom_call.1} parent=1 // pred_check_branch
      %27 = sbr.rel (0) target = $region9
    $region8: #{tpu_custom_call.1} parent=1 // pred_region
      _
    $region9: #{tpu_custom_call.1} parent=1 // pred_fallthru
      _
    // Predicated region
    $region10: #{tpu_custom_call.1} parent=1 // pred_check
      _
    $region11: #{tpu_custom_call.1} parent=1 // pred_check_branch
      %29 = sbr.rel (0) target = $region13
    $region12: #{tpu_custom_call.1} parent=1 // pred_region
      _
    $region13: #{tpu_custom_call.1} parent=1 // pred_fallthru
      _
    // Predicated region
    $region14: #{tpu_custom_call.1} parent=1 // pred_check
      _
    $region15: #{tpu_custom_call.1} parent=1 // pred_check_branch
      %31 = sbr.rel (0) target = $region17
    $region16: #{tpu_custom_call.1} parent=1 // pred_region
      _
    $region17: #{tpu_custom_call.1} parent=1 // pred_fallthru
      _
    // Predicated region
    $region18: #{tpu_custom_call.1} parent=1 // pred_check
      _
    $region19: #{tpu_custom_call.1} parent=1 // pred_check_branch
      %33 = sbr.rel (0) target = $region21
    $region20: #{tpu_custom_call.1} parent=1 // pred_region
      _
    $region21: #{tpu_custom_call.1} parent=1 // pred_fallthru
      _
    // Predicated region
    $region22: #{tpu_custom_call.1} parent=1 // pred_check
      _
    $region23: #{tpu_custom_call.1} parent=1 // pred_check_branch
      %35 = sbr.rel (0) target = $region25
    $region24: #{tpu_custom_call.1} parent=1 // pred_region
      _
    $region25: #{tpu_custom_call.1} parent=1 // pred_fallthru
      _
    // Predicated region
    $region26: #{tpu_custom_call.1} parent=1 // pred_check
      _
    $region27: #{tpu_custom_call.1} parent=1 // pred_check_branch
      %37 = sbr.rel (0) target = $region29
    $region28: #{tpu_custom_call.1} parent=1 // pred_region
      _
    $region29: #{tpu_custom_call.1} parent=1 // pred_fallthru
      _
    // Predicated region
    $region30: #{tpu_custom_call.1} parent=1 // pred_check
      _
    $region31: #{tpu_custom_call.1} parent=1 // pred_check_branch
      %39 = sbr.rel (0) target = $region33
    $region32: #{tpu_custom_call.1} parent=1 // pred_region
      _
    $region33: #{tpu_custom_call.1} parent=1 // pred_fallthru
      _
    // Predicated region
    $region34: #{tpu_custom_call.1} parent=1 // pred_check
      _
    $region35: #{tpu_custom_call.1} parent=1 // pred_check_branch
      %41 = sbr.rel (0) target = $region37
    $region36: #{tpu_custom_call.1} parent=1 // pred_region
      _
    $region37: #{tpu_custom_call.1} parent=1 // pred_fallthru
      _
    // Predicated region
    $region38: #{tpu_custom_call.1} parent=1 // pred_check
      _
    $region39: #{tpu_custom_call.1} parent=1 // pred_check_branch
      %43 = sbr.rel (0) target = $region41
    $region40: #{tpu_custom_call.1} parent=1 // pred_region
      _
    $region41: #{tpu_custom_call.1} parent=1 // pred_fallthru
      _
    // Predicated region
    $region42: #{tpu_custom_call.1} parent=1 // pred_check
      _
    $region43: #{tpu_custom_call.1} parent=1 // pred_check_branch
      %45 = sbr.rel (0) target = $region45
    $region44: #{tpu_custom_call.1} parent=1 // pred_region
      _
    $region45: #{tpu_custom_call.1} parent=1 // pred_fallthru
      _
    // Predicated region
    $region46: #{tpu_custom_call.1} parent=1 // pred_check
      _
    $region47: #{tpu_custom_call.1} parent=1 // pred_check_branch
      %47 = sbr.rel (0) target = $region49
    $region48: #{tpu_custom_call.1} parent=1 // pred_region
      _
    $region49: #{tpu_custom_call.1} parent=1 // pred_fallthru
      _
    // Predicated region
    $region50: #{tpu_custom_call.1} parent=1 // pred_check
      _
    $region51: #{tpu_custom_call.1} parent=1 // pred_check_branch
      %49 = sbr.rel (0) target = $region53
    $region52: #{tpu_custom_call.1} parent=1 // pred_region
      _
    $region53: #{tpu_custom_call.1} parent=1 // pred_fallthru
      _
    // Predicated region
    $region54: #{tpu_custom_call.1} parent=1 // pred_check
      _
    $region55: #{tpu_custom_call.1} parent=1 // pred_check_branch
      %51 = sbr.rel (0) target = $region57
    $region56: #{tpu_custom_call.1} parent=1 // pred_region
      _
    $region57: #{tpu_custom_call.1} parent=1 // pred_fallthru
      _
    // Predicated region
    $region58: #{tpu_custom_call.1} parent=1 // pred_check
      _
    $region59: #{tpu_custom_call.1} parent=1 // pred_check_branch
      %53 = sbr.rel (0) target = $region61
    $region60: #{tpu_custom_call.1} parent=1 // pred_region
      _
    $region61: #{tpu_custom_call.1} parent=1 // pred_fallthru
      _
    // Predicated region
    $region62: #{tpu_custom_call.1} parent=1 // pred_check
      _
    $region63: #{tpu_custom_call.1} parent=1 // pred_check_branch
      %55 = sbr.rel (0) target = $region65
    $region64: #{tpu_custom_call.1} parent=1 // pred_region
      _
    $region65: #{tpu_custom_call.1} parent=1 // pred_fallthru
      _
    // Predicated region
    $region66: #{tpu_custom_call.1} parent=1 // pred_check
      _
    $region67: #{tpu_custom_call.1} parent=1 // pred_check_branch
      %57 = sbr.rel (0) target = $region69
    $region68: #{tpu_custom_call.1} parent=1 // pred_region
      _
    $region69: #{tpu_custom_call.1} parent=1 // pred_fallthru
      _
    // Predicated region
    $region70: #{tpu_custom_call.1} parent=1 // pred_check
      _
    $region71: #{tpu_custom_call.1} parent=1 // pred_check_branch
      %59 = sbr.rel (0) target = $region73
    $region72: #{tpu_custom_call.1} parent=1 // pred_region
      _
    $region73: #{tpu_custom_call.1} parent=1 // pred_fallthru
      _
    %v61 = vld [vmem:[%s2] sm:$0xf]
    %v62 = vld [vmem:[%s2 + $0x4] sm:$0xf]
    %v63 = vld [vmem:[%s2 + $0x8] sm:$0xf]
    %v64 = vld [vmem:[%s2 + $0xc] sm:$0xf]
    %v65 = vld [vmem:[%s2 + $0x10] sm:$0xf]
    %v66 = vld [vmem:[%s2 + $0x14] sm:$0xf]
    %v67 = vld [vmem:[%s3] sm:$0xf]
    %v68 = vld [vmem:[%s3 + $0x4] sm:$0xf]
    %v69 = vld [vmem:[%s3 + $0x8] sm:$0xf]
    %v70 = vld [vmem:[%s3 + $0xc] sm:$0xf]
    %v71 = vld [vmem:[%s3 + $0x10] sm:$0xf]
    %v72 = vld [vmem:[%s3 + $0x14] sm:$0xf]
    %v73 = vld [vmem:[%s4] sm:$0xf]
    %v74 = vld [vmem:[%s4 + $0x4] sm:$0xf]
    %v75 = vld [vmem:[%s1] sm:$0xff]
    %v76 = vld [vmem:[%s1 + $0x8] sm:$0xff]
    %v77 = vld [vmem:[%s1 + $0x10] sm:$0xff]
    %v78 = vld [vmem:[%s1 + $0x18] sm:$0xff]
    %v79 = vld [vmem:[%s1 + $0x20] sm:$0xff]
    %v80 = vld [vmem:[%s1 + $0x28] sm:$0xff]
    %v81 = vld [vmem:[%s0] sm:$0xff]
    %v82 = vld [vmem:[%s0 + $0x8] sm:$0xff]
    %v83 = vld [vmem:[%s5] sm:$0xff]
    %v84 = vld [vmem:[%s5 + $0x8] sm:$0xff]
    %v85 = vld [vmem:[%s6] sm:$0x1]
    %v86 = vld [vmem:[%s7] sm:$0xff]
    %v87 = vld [vmem:[%s7 + $0x8] sm:$0xff]
    %v88 = vld [vmem:[%s7 + $0x10] sm:$0xff]
    %v89 = vld [vmem:[%s7 + $0x18] sm:$0xff]
    %v90 = vld [vmem:[%s7 + $0x20] sm:$0x3]
    %v91 = vld [vmem:[%s8] sm:$0x3]
    %v92 = vld [vmem:[%s9] sm:$0x1]
    %v93 = vld [vmem:[%s10] sm:$0x1]
    %vm94 = vcmask 130048
    %v96 = vsel %vm94, %v81, 0
    %v99 = vsel %vm94, %v82, 0
    %101 = vmatprep.subr.mxu0 0.0
    %102 = vmatpush1.msra.mxu0 0.0
    %103 = vmatprep.subr.mxu0 0.0
    %104 = vmatpush1.msra.mxu0 0.0
    %105 = vmatprep.subr.mxu0 0.0
    %106 = vmatpush1.msra.mxu0 0.0
    %107 = vmatprep.subr.mxu0 0.0
    %108 = vmatpush1.msra.mxu0 0.0
    %109 = vmatprep.subr.mxu0 0.0
    %110 = vmatpush1.msra.mxu0 0.0
    %111 = vmatprep.subr.mxu0 0.0
    %112 = vmatpush1.msra.mxu0 0.0
    %113 = vmatprep.subr.mxu0 0.0
    %114 = vmatpush1.msra.mxu0 0.0
    %115 = vmatprep.subr.mxu0 0.0
    %116 = vmatpush1.msra.mxu0 0.0
    %117 = vmatprep.subr.mxu0 0.0
    %118 = vmatpush1.msra.mxu0 0.0
    %119 = vmatprep.subr.mxu0 0.0
    %120 = vmatpush1.msra.mxu0 0.0
    %121 = vmatprep.subr.mxu0 0.0
    %122 = vmatpush1.msra.mxu0 0.0
    %123 = vmatprep.subr.mxu0 0.0
    %124 = vmatpush1.msra.mxu0 0.0
    %125 = vmatprep.subr.mxu0 0.0
    %126 = vmatpush1.msra.mxu0 0.0
    %127 = vmatprep.subr.mxu0 0.0
    %128 = vmatpush1.msra.mxu0 0.0
    %129 = vmatprep.subr.mxu0 0.0
    %130 = vmatpush1.msra.mxu0 %v84
    %131 = vmatprep.subr.mxu0 0.0
    %132 = vmatpush1.msra.mxu0 %v83
    %133 = vmatprep.subr.mxu0 0.0
    %134 = vmatpush2.msra.mxu0 0.0
    %135 = vmatprep.subr.mxu0 0.0
    %136 = vmatpush2.msra.mxu0 0.0
    %137 = vmatprep.subr.mxu0 0.0
    %138 = vmatpush2.msra.mxu0 0.0
    %139 = vmatprep.subr.mxu0 0.0
    %140 = vmatpush2.msra.mxu0 0.0
    %141 = vmatprep.subr.mxu0 0.0
    %142 = vmatpush2.msra.mxu0 0.0
    %143 = vmatprep.subr.mxu0 0.0
    %144 = vmatpush2.msra.mxu0 0.0
    %145 = vmatprep.subr.mxu0 0.0
    %146 = vmatpush2.msra.mxu0 0.0
    %147 = vmatprep.subr.mxu0 0.0
    %148 = vmatpush2.msra.mxu0 0.0
    %149 = vmatprep.subr.mxu0 0.0
    %150 = vmatpush2.msra.mxu0 0.0
    %151 = vmatprep.subr.mxu0 0.0
    %152 = vmatpush2.msra.mxu0 0.0
    %153 = vmatprep.subr.mxu0 0.0
    %154 = vmatpush2.msra.mxu0 0.0
    %155 = vmatprep.subr.mxu0 0.0
    %156 = vmatpush2.msra.mxu0 0.0
    %157 = vmatprep.subr.mxu0 0.0
    %158 = vmatpush2.msra.mxu0 0.0
    %159 = vmatprep.subr.mxu0 0.0
    %160 = vmatpush2.msra.mxu0 0.0
    %161 = vmatprep.subr.mxu0 0.0
    %162 = vmatpush2.msra.mxu0 0.0
    %163 = vmatprep.subr.mxu0 0.0
    %164 = vmatpush2.msra.mxu0 0.0
    %165 = vmatprep.mubr.f32.mxu0 0.0
    %166 = vmatmul.mubr.f32.gmra.mxu0 %v96
    %v167 = vpop.f32.mrf.mxu0
    %v168 = vadd.f32 0.0, %v167
    %v169 = vpop.f32.mrf.mxu0
    %170 = vmatprep.mubr.f32.mxu0 0.0
    %171 = vmatmul.mubr.f32.gmra.mxu0 %v99
    %v172 = vpop.f32.mrf.mxu0
    %v173 = vadd.f32 0.0, %v172
    %v174 = vpop.f32.mrf.mxu0
    %175 = vdwg.mxu0
    %v177 = vlaneseq
    %v178 = vshrl.u32 %v177, 7
    %v179 = vsub.s32 0, %v178
    %v180 = vrot.slane %v85, %v179
    %v182 = vadd.f32 %v168, %v180
    %v183 = vadd.f32 %v173, %v180
    %v184 = vpack.c.bf16 %v183, %v182
    %v191 = vunpack.c.l.b16 %v61
    %v192 = vunpack.c.l.b16 %v62
    %v193 = vunpack.c.l.b16 %v63
    %v194 = vunpack.c.l.b16 %v64
    %v195 = vunpack.c.l.b16 %v65
    %v196 = vunpack.c.l.b16 %v66
    %v197 = vpack.c.b16 %v192, %v191
    %v198 = vpack.c.b16 %v194, %v193
    %v199 = vpack.c.b16 %v196, %v195
    %v201 = vsel %vm94, %v197, 0
    %v204 = vsel %vm94, %v198, 0
    %v207 = vsel %vm94, %v199, 0
    %209 = vmatprep.subr.bf16.mxu0 0
    %210 = vmatpush1.bf16.msra.mxu0 0
    %211 = vmatprep.subr.bf16.mxu0 0
    %212 = vmatpush1.bf16.msra.mxu0 0
    %213 = vmatprep.subr.bf16.mxu0 0
    %214 = vmatpush1.bf16.msra.mxu0 0
    %215 = vmatprep.subr.bf16.mxu0 0
    %216 = vmatpush1.bf16.msra.mxu0 0
    %217 = vmatprep.subr.bf16.mxu0 0
    %218 = vmatpush1.bf16.msra.mxu0 0
    %219 = vmatprep.subr.bf16.mxu0 0
    %220 = vmatpush1.bf16.msra.mxu0 0
    %221 = vmatprep.subr.bf16.mxu0 0
    %222 = vmatpush1.bf16.msra.mxu0 0
    %223 = vmatprep.subr.bf16.mxu0 0
    %224 = vmatpush1.bf16.msra.mxu0 %v184
    %225 = vmatprep.subr.bf16.mxu0 0
    %226 = vmatpush2.bf16.msra.mxu0 0
    %227 = vmatprep.subr.bf16.mxu0 0
    %228 = vmatpush2.bf16.msra.mxu0 0
    %229 = vmatprep.subr.bf16.mxu0 0
    %230 = vmatpush2.bf16.msra.mxu0 0
    %231 = vmatprep.subr.bf16.mxu0 0
    %232 = vmatpush2.bf16.msra.mxu0 0
    %233 = vmatprep.subr.bf16.mxu0 0
    %234 = vmatpush2.bf16.msra.mxu0 0
    %235 = vmatprep.subr.bf16.mxu0 0
    %236 = vmatpush2.bf16.msra.mxu0 0
    %237 = vmatprep.subr.bf16.mxu0 0
    %238 = vmatpush2.bf16.msra.mxu0 0
    %239 = vmatprep.subr.bf16.mxu0 0
    %240 = vmatpush2.bf16.msra.mxu0 0
    %241 = vmatprep.mubr.bf16.mxu0 0
    %242 = vmatmul.mubr.bf16.gmra.mxu0 %v201
    %v243 = vpop.f32.mrf.mxu0
    %v244 = vadd.f32 0.0, %v243
    %v245 = vpop.f32.mrf.mxu0
    %v246 = vpop.f32.mrf.mxu0
    %v247 = vadd.f32 0.0, %v246
    %v248 = vpop.f32.mrf.mxu0
    %249 = vmatprep.mubr.bf16.mxu0 0
    %250 = vmatmul.mubr.bf16.gmra.mxu0 %v204
    %v251 = vpop.f32.mrf.mxu0
    %v252 = vadd.f32 0.0, %v251
    %v253 = vpop.f32.mrf.mxu0
    %v254 = vpop.f32.mrf.mxu0
    %v255 = vadd.f32 0.0, %v254
    %v256 = vpop.f32.mrf.mxu0
    %257 = vmatprep.mubr.bf16.mxu0 0
    %258 = vmatmul.mubr.bf16.gmra.mxu0 %v207
    %v259 = vpop.f32.mrf.mxu0
    %v260 = vadd.f32 0.0, %v259
    %v261 = vpop.f32.mrf.mxu0
    %v262 = vpop.f32.mrf.mxu0
    %v263 = vadd.f32 0.0, %v262
    %v264 = vpop.f32.mrf.mxu0
    %265 = vdwg.mxu0
    %v266 = vpack.c.bf16 %v173, %v168
    %v273 = vunpack.c.l.b16 %v67
    %v274 = vunpack.c.l.b16 %v68
    %v275 = vunpack.c.l.b16 %v69
    %v276 = vunpack.c.l.b16 %v70
    %v277 = vunpack.c.l.b16 %v71
    %v278 = vunpack.c.l.b16 %v72
    %v279 = vpack.c.b16 %v274, %v273
    %v280 = vpack.c.b16 %v276, %v275
    %v281 = vpack.c.b16 %v278, %v277
    %283 = vrot.lane.b32.xlu0 %v266, 94
    %v284 = vpop.permute.xlu0 %283
    %v287 = vsel %vm94, %v279, 0
    %v290 = vsel %vm94, %v280, 0
    %v293 = vsel %vm94, %v281, 0
    %295 = vmatprep.subr.bf16.mxu0 0
    %296 = vmatpush1.bf16.msra.mxu0 0
    %297 = vmatprep.subr.bf16.mxu0 0
    %298 = vmatpush1.bf16.msra.mxu0 0
    %299 = vmatprep.subr.bf16.mxu0 0
    %300 = vmatpush1.bf16.msra.mxu0 0
    %301 = vmatprep.subr.bf16.mxu0 0
    %302 = vmatpush1.bf16.msra.mxu0 0
    %303 = vmatprep.subr.bf16.mxu0 0
    %304 = vmatpush1.bf16.msra.mxu0 0
    %305 = vmatprep.subr.bf16.mxu0 0
    %306 = vmatpush1.bf16.msra.mxu0 0
    %307 = vmatprep.subr.bf16.mxu0 0
    %308 = vmatpush1.bf16.msra.mxu0 0
    %309 = vmatprep.subr.bf16.mxu0 0
    %310 = vmatpush1.bf16.msra.mxu0 %v284
    %311 = vmatprep.subr.bf16.mxu0 0
    %312 = vmatpush2.bf16.msra.mxu0 0
    %313 = vmatprep.subr.bf16.mxu0 0
    %314 = vmatpush2.bf16.msra.mxu0 0
    %315 = vmatprep.subr.bf16.mxu0 0
    %316 = vmatpush2.bf16.msra.mxu0 0
    %317 = vmatprep.subr.bf16.mxu0 0
    %318 = vmatpush2.bf16.msra.mxu0 0
    %319 = vmatprep.subr.bf16.mxu0 0
    %320 = vmatpush2.bf16.msra.mxu0 0
    %321 = vmatprep.subr.bf16.mxu0 0
    %322 = vmatpush2.bf16.msra.mxu0 0
    %323 = vmatprep.subr.bf16.mxu0 0
    %324 = vmatpush2.bf16.msra.mxu0 0
    %325 = vmatprep.subr.bf16.mxu0 0
    %326 = vmatpush2.bf16.msra.mxu0 0
    %327 = vmatprep.mubr.bf16.mxu0 0
    %328 = vmatmul.mubr.bf16.gmra.mxu0 %v287
    %v329 = vpop.f32.mrf.mxu0
    %v330 = vadd.f32 0.0, %v329
    %v331 = vpop.f32.mrf.mxu0
    %v332 = vpop.f32.mrf.mxu0
    %v333 = vadd.f32 0.0, %v332
    %v334 = vpop.f32.mrf.mxu0
    %335 = vmatprep.mubr.bf16.mxu0 0
    %336 = vmatmul.mubr.bf16.gmra.mxu0 %v290
    %v337 = vpop.f32.mrf.mxu0
    %v338 = vadd.f32 0.0, %v337
    %v339 = vpop.f32.mrf.mxu0
    %v340 = vpop.f32.mrf.mxu0
    %v341 = vadd.f32 0.0, %v340
    %v342 = vpop.f32.mrf.mxu0
    %343 = vmatprep.mubr.bf16.mxu0 0
    %344 = vmatmul.mubr.bf16.gmra.mxu0 %v293
    %v345 = vpop.f32.mrf.mxu0
    %v346 = vadd.f32 0.0, %v345
    %v347 = vpop.f32.mrf.mxu0
    %v348 = vpop.f32.mrf.mxu0
    %v349 = vadd.f32 0.0, %v348
    %v350 = vpop.f32.mrf.mxu0
    %351 = vdwg.mxu0
    %vm352 = vcmask 277504
    %v354 = vsel %vm352, %v244, 0
    %v357 = vsel %vm352, %v247, 0
    %v360 = vsel %vm352, %v252, 0
    %v363 = vsel %vm352, %v255, 0
    %v366 = vsel %vm352, %v260, 0
    %v369 = vsel %vm352, %v263, 0
    %vm371 = vcmask 1041408
    %v373 = vsel %vm371, %v90, 0
    %375 = vmatprep.subr.mxu0 0.0
    %376 = vmatpush1.msra.mxu0 0.0
    %377 = vmatprep.subr.mxu0 0.0
    %378 = vmatpush1.msra.mxu0 0.0
    %379 = vmatprep.subr.mxu0 0.0
    %380 = vmatpush1.msra.mxu0 0.0
    %381 = vmatprep.subr.mxu0 0.0
    %382 = vmatpush1.msra.mxu0 0.0
    %383 = vmatprep.subr.mxu0 0.0
    %384 = vmatpush1.msra.mxu0 0.0
    %385 = vmatprep.subr.mxu0 0.0
    %386 = vmatpush1.msra.mxu0 0.0
    %387 = vmatprep.subr.mxu0 0.0
    %388 = vmatpush1.msra.mxu0 0.0
    %389 = vmatprep.subr.mxu0 0.0
    %390 = vmatpush1.msra.mxu0 0.0
    %391 = vmatprep.subr.mxu0 0.0
    %392 = vmatpush1.msra.mxu0 0.0
    %393 = vmatprep.subr.mxu0 0.0
    %394 = vmatpush1.msra.mxu0 0.0
    %395 = vmatprep.subr.mxu0 0.0
    %396 = vmatpush1.msra.mxu0 0.0
    %397 = vmatprep.subr.mxu0 0.0
    %398 = vmatpush1.msra.mxu0 %v373
    %399 = vmatprep.subr.mxu0 0.0
    %400 = vmatpush1.msra.mxu0 %v89
    %401 = vmatprep.subr.mxu0 0.0
    %402 = vmatpush1.msra.mxu0 %v88
    %403 = vmatprep.subr.mxu0 0.0
    %404 = vmatpush1.msra.mxu0 %v87
    %405 = vmatprep.subr.mxu0 0.0
    %406 = vmatpush1.msra.mxu0 %v86
    %407 = vmatprep.subr.mxu0 0.0
    %408 = vmatpush2.msra.mxu0 0.0
    %409 = vmatprep.subr.mxu0 0.0
    %410 = vmatpush2.msra.mxu0 0.0
    %411 = vmatprep.subr.mxu0 0.0
    %412 = vmatpush2.msra.mxu0 0.0
    %413 = vmatprep.subr.mxu0 0.0
    %414 = vmatpush2.msra.mxu0 0.0
    %415 = vmatprep.subr.mxu0 0.0
    %416 = vmatpush2.msra.mxu0 0.0
    %417 = vmatprep.subr.mxu0 0.0
    %418 = vmatpush2.msra.mxu0 0.0
    %419 = vmatprep.subr.mxu0 0.0
    %420 = vmatpush2.msra.mxu0 0.0
    %421 = vmatprep.subr.mxu0 0.0
    %422 = vmatpush2.msra.mxu0 0.0
    %423 = vmatprep.subr.mxu0 0.0
    %424 = vmatpush2.msra.mxu0 0.0
    %425 = vmatprep.subr.mxu0 0.0
    %426 = vmatpush2.msra.mxu0 0.0
    %427 = vmatprep.subr.mxu0 0.0
    %428 = vmatpush2.msra.mxu0 0.0
    %429 = vmatprep.subr.mxu0 0.0
    %430 = vmatpush2.msra.mxu0 0.0
    %431 = vmatprep.subr.mxu0 0.0
    %432 = vmatpush2.msra.mxu0 0.0
    %433 = vmatprep.subr.mxu0 0.0
    %434 = vmatpush2.msra.mxu0 0.0
    %435 = vmatprep.subr.mxu0 0.0
    %436 = vmatpush2.msra.mxu0 0.0
    %437 = vmatprep.subr.mxu0 0.0
    %438 = vmatpush2.msra.mxu0 0.0
    %439 = vmatprep.mubr.f32.mxu0 0.0
    %440 = vmatmul.mubr.f32.gmra.mxu0 %v354
    %v441 = vpop.f32.mrf.mxu0
    %v442 = vadd.f32 %v330, %v441
    %v443 = vpop.f32.mrf.mxu0
    %444 = vmatprep.mubr.f32.mxu0 0.0
    %445 = vmatmul.mubr.f32.gmra.mxu0 %v357
    %v446 = vpop.f32.mrf.mxu0
    %v447 = vadd.f32 %v333, %v446
    %v448 = vpop.f32.mrf.mxu0
    %449 = vmatprep.mubr.f32.mxu0 0.0
    %450 = vmatmul.mubr.f32.gmra.mxu0 %v360
    %v451 = vpop.f32.mrf.mxu0
    %v452 = vadd.f32 %v338, %v451
    %v453 = vpop.f32.mrf.mxu0
    %454 = vmatprep.mubr.f32.mxu0 0.0
    %455 = vmatmul.mubr.f32.gmra.mxu0 %v363
    %v456 = vpop.f32.mrf.mxu0
    %v457 = vadd.f32 %v341, %v456
    %v458 = vpop.f32.mrf.mxu0
    %459 = vmatprep.mubr.f32.mxu0 0.0
    %460 = vmatmul.mubr.f32.gmra.mxu0 %v366
    %v461 = vpop.f32.mrf.mxu0
    %v462 = vadd.f32 %v346, %v461
    %v463 = vpop.f32.mrf.mxu0
    %464 = vmatprep.mubr.f32.mxu0 0.0
    %465 = vmatmul.mubr.f32.gmra.mxu0 %v369
    %v466 = vpop.f32.mrf.mxu0
    %v467 = vadd.f32 %v349, %v466
    %v468 = vpop.f32.mrf.mxu0
    %469 = vdwg.mxu0
    %471 = vset.pattern.permute.xlu0 0
    %472 = vperm.xlu0 %471, %v75
    %v473 = vpop.permute.xlu0 %472
    %476 = vset.pattern.permute.xlu0 0
    %477 = vperm.xlu0 %476, %v76
    %v478 = vpop.permute.xlu0 %477
    %481 = vset.pattern.permute.xlu0 0
    %482 = vperm.xlu0 %481, %v77
    %v483 = vpop.permute.xlu0 %482
    %486 = vset.pattern.permute.xlu0 0
    %487 = vperm.xlu0 %486, %v78
    %v488 = vpop.permute.xlu0 %487
    %491 = vset.pattern.permute.xlu0 0
    %492 = vperm.xlu0 %491, %v79
    %v493 = vpop.permute.xlu0 %492
    %496 = vset.pattern.permute.xlu0 0
    %497 = vperm.xlu0 %496, %v80
    %v498 = vpop.permute.xlu0 %497
    %v501 = vlaneseq
    %v502 = vshrl.u32 %v501, 7
    %v503 = vsub.s32 0, %v502
    %v504 = vrot.slane %v92, %v503
    %v506 = vmul.f32 %v473, %v504
    %v507 = vmul.f32 %v478, %v504
    %v508 = vmul.f32 %v483, %v504
    %v509 = vmul.f32 %v488, %v504
    %v510 = vmul.f32 %v493, %v504
    %v511 = vmul.f32 %v498, %v504
    %v512 = vadd.f32 %v442, %v506
    %v513 = vadd.f32 %v447, %v507
    %v514 = vadd.f32 %v452, %v508
    %v515 = vadd.f32 %v457, %v509
    %v516 = vadd.f32 %v462, %v510
    %v517 = vadd.f32 %v467, %v511
    %vm518 = vcmp.gt.f32.partialorder %v512, 0.0
    %vm519 = vcmp.gt.f32.partialorder %v513, 0.0
    %vm520 = vcmp.gt.f32.partialorder %v514, 0.0
    %vm521 = vcmp.gt.f32.partialorder %v515, 0.0
    %vm522 = vcmp.gt.f32.partialorder %v516, 0.0
    %vm523 = vcmp.gt.f32.partialorder %v517, 0.0
    %v524 = vmul.f32 %v512, 0.2
    %v525 = vmul.f32 %v513, 0.2
    %v526 = vmul.f32 %v514, 0.2
    %v527 = vmul.f32 %v515, 0.2
    %v528 = vmul.f32 %v516, 0.2
    %v529 = vmul.f32 %v517, 0.2
    %v530 = vsel %vm518, %v512, %v524
    %v531 = vsel %vm519, %v513, %v525
    %v532 = vsel %vm520, %v514, %v526
    %v533 = vsel %vm521, %v515, %v527
    %v534 = vsel %vm522, %v516, %v528
    %v535 = vsel %vm523, %v517, %v529
    %vm536 = vcmask 15360
    %v537 = vsel %vm536, %v530, -inf
    %v538 = vsel %vm536, %v531, -inf
    %v539 = vsel %vm536, %v532, -inf
    %v540 = vsel %vm536, %v533, -inf
    %v541 = vsel %vm536, %v534, -inf
    %v542 = vmax.f32 %v537, %v541
    %v543 = vsel %vm536, %v535, -inf
    %v544 = vmax.f32 %v538, %v543
    %v545 = vmax.f32 %v542, %v544
    %v546 = vmax.f32 %v539, %v540
    %v547 = vmax.f32 %v545, %v546
    %548 = vmax.xlane.f32.xlu0 %v547
    %v549 = vpop.xlane.xlu0 %548
    %v550 = vrot.slane %v549, 4
    %v551 = vmax.f32 %v549, %v550
    %v552 = vrot.slane %v551, 2
    %v553 = vmax.f32 %v551, %v552
    %v554 = vrot.slane %v553, 1
    %v555 = vmax.f32 %v553, %v554
    %s556 = vtos %v555
    %v557 = vstv %s556
    %v558 = vsub.f32 %v530, %v557
    %v559 = vsub.f32 %v531, %v557
    %v560 = vsub.f32 %v532, %v557
    %v561 = vsub.f32 %v533, %v557
    %v562 = vsub.f32 %v534, %v557
    %v563 = vsub.f32 %v535, %v557
    %v564 = vmul.f32 %v558, 1.442695
    %v565 = vpow.pop %v564
    %v566 = vmul.f32 %v559, 1.442695
    %v567 = vpow.pop %v566
    %v568 = vmul.f32 %v560, 1.442695
    %v569 = vpow.pop %v568
    %v570 = vmul.f32 %v561, 1.442695
    %v571 = vpow.pop %v570
    %v572 = vmul.f32 %v562, 1.442695
    %v573 = vpow.pop %v572
    %v574 = vmul.f32 %v563, 1.442695
    %v575 = vpow.pop %v574
    %v577 = vsel %vm536, %v565, 0
    %v580 = vsel %vm536, %v567, 0
    %v583 = vsel %vm536, %v569, 0
    %v586 = vsel %vm536, %v571, 0
    %v589 = vsel %vm536, %v573, 0
    %v592 = vsel %vm536, %v575, 0
    %v595 = vsel %vm371, %v91, 0
    %597 = vmatprep.subr.mxu0 0.0
    %598 = vmatpush1.msra.mxu0 0.0
    %599 = vmatprep.subr.mxu0 0.0
    %600 = vmatpush1.msra.mxu0 0.0
    %601 = vmatprep.subr.mxu0 0.0
    %602 = vmatpush1.msra.mxu0 0.0
    %603 = vmatprep.subr.mxu0 0.0
    %604 = vmatpush1.msra.mxu0 0.0
    %605 = vmatprep.subr.mxu0 0.0
    %606 = vmatpush1.msra.mxu0 0.0
    %607 = vmatprep.subr.mxu0 0.0
    %608 = vmatpush1.msra.mxu0 0.0
    %609 = vmatprep.subr.mxu0 0.0
    %610 = vmatpush1.msra.mxu0 0.0
    %611 = vmatprep.subr.mxu0 0.0
    %612 = vmatpush1.msra.mxu0 0.0
    %613 = vmatprep.subr.mxu0 0.0
    %614 = vmatpush1.msra.mxu0 0.0
    %615 = vmatprep.subr.mxu0 0.0
    %616 = vmatpush1.msra.mxu0 0.0
    %617 = vmatprep.subr.mxu0 0.0
    %618 = vmatpush1.msra.mxu0 0.0
    %619 = vmatprep.subr.mxu0 0.0
    %620 = vmatpush1.msra.mxu0 0.0
    %621 = vmatprep.subr.mxu0 0.0
    %622 = vmatpush1.msra.mxu0 0.0
    %623 = vmatprep.subr.mxu0 0.0
    %624 = vmatpush1.msra.mxu0 0.0
    %625 = vmatprep.subr.mxu0 0.0
    %626 = vmatpush1.msra.mxu0 0.0
    %627 = vmatprep.subr.mxu0 0.0
    %628 = vmatpush1.msra.mxu0 %v595
    %629 = vmatprep.subr.mxu0 0.0
    %630 = vmatpush2.msra.mxu0 0.0
    %631 = vmatprep.subr.mxu0 0.0
    %632 = vmatpush2.msra.mxu0 0.0
    %633 = vmatprep.subr.mxu0 0.0
    %634 = vmatpush2.msra.mxu0 0.0
    %635 = vmatprep.subr.mxu0 0.0
    %636 = vmatpush2.msra.mxu0 0.0
    %637 = vmatprep.subr.mxu0 0.0
    %638 = vmatpush2.msra.mxu0 0.0
    %639 = vmatprep.subr.mxu0 0.0
    %640 = vmatpush2.msra.mxu0 0.0
    %641 = vmatprep.subr.mxu0 0.0
    %642 = vmatpush2.msra.mxu0 0.0
    %643 = vmatprep.subr.mxu0 0.0
    %644 = vmatpush2.msra.mxu0 0.0
    %645 = vmatprep.subr.mxu0 0.0
    %646 = vmatpush2.msra.mxu0 0.0
    %647 = vmatprep.subr.mxu0 0.0
    %648 = vmatpush2.msra.mxu0 0.0
    %649 = vmatprep.subr.mxu0 0.0
    %650 = vmatpush2.msra.mxu0 0.0
    %651 = vmatprep.subr.mxu0 0.0
    %652 = vmatpush2.msra.mxu0 0.0
    %653 = vmatprep.subr.mxu0 0.0
    %654 = vmatpush2.msra.mxu0 0.0
    %655 = vmatprep.subr.mxu0 0.0
    %656 = vmatpush2.msra.mxu0 0.0
    %657 = vmatprep.subr.mxu0 0.0
    %658 = vmatpush2.msra.mxu0 0.0
    %659 = vmatprep.subr.mxu0 0.0
    %660 = vmatpush2.msra.mxu0 0.0
    %661 = vmatprep.mubr.f32.mxu0 0.0
    %662 = vmatmul.mubr.f32.gmra.mxu0 %v577
    %v663 = vpop.f32.mrf.mxu0
    %v664 = vadd.f32 0.0, %v663
    %v665 = vpop.f32.mrf.mxu0
    %666 = vmatprep.mubr.f32.mxu0 0.0
    %667 = vmatmul.mubr.f32.gmra.mxu0 %v580
    %v668 = vpop.f32.mrf.mxu0
    %v669 = vadd.f32 0.0, %v668
    %v670 = vpop.f32.mrf.mxu0
    %671 = vmatprep.mubr.f32.mxu0 0.0
    %672 = vmatmul.mubr.f32.gmra.mxu0 %v583
    %v673 = vpop.f32.mrf.mxu0
    %v674 = vadd.f32 0.0, %v673
    %v675 = vpop.f32.mrf.mxu0
    %676 = vmatprep.mubr.f32.mxu0 0.0
    %677 = vmatmul.mubr.f32.gmra.mxu0 %v586
    %v678 = vpop.f32.mrf.mxu0
    %v679 = vadd.f32 0.0, %v678
    %v680 = vpop.f32.mrf.mxu0
    %681 = vmatprep.mubr.f32.mxu0 0.0
    %682 = vmatmul.mubr.f32.gmra.mxu0 %v589
    %v683 = vpop.f32.mrf.mxu0
    %v684 = vadd.f32 0.0, %v683
    %v685 = vpop.f32.mrf.mxu0
    %686 = vmatprep.mubr.f32.mxu0 0.0
    %687 = vmatmul.mubr.f32.gmra.mxu0 %v592
    %v688 = vpop.f32.mrf.mxu0
    %v689 = vadd.f32 0.0, %v688
    %v690 = vpop.f32.mrf.mxu0
    %691 = vdwg.mxu0
    %v692 = vmul.f32 %v244, %v664
    %v693 = vmul.f32 %v247, %v669
    %v694 = vmul.f32 %v252, %v674
    %v695 = vmul.f32 %v255, %v679
    %v696 = vmul.f32 %v260, %v684
    %v697 = vmul.f32 %v263, %v689
    %v698 = vpack.c.bf16 %v693, %v692
    %v699 = vpack.c.bf16 %v695, %v694
    %v700 = vpack.c.bf16 %v697, %v696
    %v703 = vunpack.c.l.b16 %v73
    %v704 = vunpack.c.l.b16 %v74
    %v705 = vpack.c.b16 %v704, %v703
    %vm706 = vcmask 392192
    %v708 = vsel %vm706, %v705, 0
    %710 = vmatprep.subr.bf16.mxu0 0
    %711 = vmatpush1.bf16.msra.mxu0 0
    %712 = vmatprep.subr.bf16.mxu0 0
    %713 = vmatpush1.bf16.msra.mxu0 0
    %714 = vmatprep.subr.bf16.mxu0 0
    %715 = vmatpush1.bf16.msra.mxu0 0
    %716 = vmatprep.subr.bf16.mxu0 0
    %717 = vmatpush1.bf16.msra.mxu0 0
    %718 = vmatprep.subr.bf16.mxu0 0
    %719 = vmatpush1.bf16.msra.mxu0 0
    %720 = vmatprep.subr.bf16.mxu0 0
    %721 = vmatpush1.bf16.msra.mxu0 %v700
    %722 = vmatprep.subr.bf16.mxu0 0
    %723 = vmatpush1.bf16.msra.mxu0 %v699
    %724 = vmatprep.subr.bf16.mxu0 0
    %725 = vmatpush1.bf16.msra.mxu0 %v698
    %726 = vmatprep.subr.bf16.mxu0 0
    %727 = vmatpush2.bf16.msra.mxu0 0
    %728 = vmatprep.subr.bf16.mxu0 0
    %729 = vmatpush2.bf16.msra.mxu0 0
    %730 = vmatprep.subr.bf16.mxu0 0
    %731 = vmatpush2.bf16.msra.mxu0 0
    %732 = vmatprep.subr.bf16.mxu0 0
    %733 = vmatpush2.bf16.msra.mxu0 0
    %734 = vmatprep.subr.bf16.mxu0 0
    %735 = vmatpush2.bf16.msra.mxu0 0
    %736 = vmatprep.subr.bf16.mxu0 0
    %737 = vmatpush2.bf16.msra.mxu0 0
    %738 = vmatprep.subr.bf16.mxu0 0
    %739 = vmatpush2.bf16.msra.mxu0 0
    %740 = vmatprep.subr.bf16.mxu0 0
    %741 = vmatpush2.bf16.msra.mxu0 0
    %742 = vmatprep.mubr.bf16.mxu0 0
    %743 = vmatmul.mubr.bf16.gmra.mxu0 %v708
    %v744 = vpop.f32.mrf.mxu0
    %v745 = vadd.f32 0.0, %v744
    %v746 = vpop.f32.mrf.mxu0
    %v747 = vpop.f32.mrf.mxu0
    %v748 = vadd.f32 0.0, %v747
    %v749 = vpop.f32.mrf.mxu0
    %750 = vdwg.mxu0
    %753 = vrot.lane.b32.xlu0 %v745, 96
    %v754 = vpop.permute.xlu0 %753
    %755 = vrot.lane.b32.xlu0 %v748, 96
    %v756 = vpop.permute.xlu0 %755
    %v757 = vsel %vm536, %v754, 0
    %v759 = vsel %vm536, %v756, 0
    %761 = vmatprep.subr.mxu0 0.0
    %762 = vmatpush1.msra.mxu0 0.0
    %763 = vmatprep.subr.mxu0 0.0
    %764 = vmatpush1.msra.mxu0 0.0
    %765 = vmatprep.subr.mxu0 0.0
    %766 = vmatpush1.msra.mxu0 0.0
    %767 = vmatprep.subr.mxu0 0.0
    %768 = vmatpush1.msra.mxu0 0.0
    %769 = vmatprep.subr.mxu0 0.0
    %770 = vmatpush1.msra.mxu0 0.0
    %771 = vmatprep.subr.mxu0 0.0
    %772 = vmatpush1.msra.mxu0 0.0
    %773 = vmatprep.subr.mxu0 0.0
    %774 = vmatpush1.msra.mxu0 0.0
    %775 = vmatprep.subr.mxu0 0.0
    %776 = vmatpush1.msra.mxu0 0.0
    %777 = vmatprep.subr.mxu0 0.0
    %778 = vmatpush1.msra.mxu0 0.0
    %779 = vmatprep.subr.mxu0 0.0
    %780 = vmatpush1.msra.mxu0 0.0
    %781 = vmatprep.subr.mxu0 0.0
    %782 = vmatpush1.msra.mxu0 0.0
    %783 = vmatprep.subr.mxu0 0.0
    %784 = vmatpush1.msra.mxu0 0.0
    %785 = vmatprep.subr.mxu0 0.0
    %786 = vmatpush1.msra.mxu0 0.0
    %787 = vmatprep.subr.mxu0 0.0
    %788 = vmatpush1.msra.mxu0 0.0
    %789 = vmatprep.subr.mxu0 0.0
    %790 = vmatpush1.msra.mxu0 0.0
    %791 = vmatprep.subr.mxu0 0.0
    %792 = vmatpush1.msra.mxu0 %v595
    %793 = vmatprep.subr.mxu0 0.0
    %794 = vmatpush2.msra.mxu0 0.0
    %795 = vmatprep.subr.mxu0 0.0
    %796 = vmatpush2.msra.mxu0 0.0
    %797 = vmatprep.subr.mxu0 0.0
    %798 = vmatpush2.msra.mxu0 0.0
    %799 = vmatprep.subr.mxu0 0.0
    %800 = vmatpush2.msra.mxu0 0.0
    %801 = vmatprep.subr.mxu0 0.0
    %802 = vmatpush2.msra.mxu0 0.0
    %803 = vmatprep.subr.mxu0 0.0
    %804 = vmatpush2.msra.mxu0 0.0
    %805 = vmatprep.subr.mxu0 0.0
    %806 = vmatpush2.msra.mxu0 0.0
    %807 = vmatprep.subr.mxu0 0.0
    %808 = vmatpush2.msra.mxu0 0.0
    %809 = vmatprep.subr.mxu0 0.0
    %810 = vmatpush2.msra.mxu0 0.0
    %811 = vmatprep.subr.mxu0 0.0
    %812 = vmatpush2.msra.mxu0 0.0
    %813 = vmatprep.subr.mxu0 0.0
    %814 = vmatpush2.msra.mxu0 0.0
    %815 = vmatprep.subr.mxu0 0.0
    %816 = vmatpush2.msra.mxu0 0.0
    %817 = vmatprep.subr.mxu0 0.0
    %818 = vmatpush2.msra.mxu0 0.0
    %819 = vmatprep.subr.mxu0 0.0
    %820 = vmatpush2.msra.mxu0 0.0
    %821 = vmatprep.subr.mxu0 0.0
    %822 = vmatpush2.msra.mxu0 0.0
    %823 = vmatprep.subr.mxu0 0.0
    %824 = vmatpush2.msra.mxu0 0.0
    %825 = vmatprep.mubr.f32.mxu0 0.0
    %826 = vmatmul.mubr.f32.gmra.mxu0 %v757
    %v827 = vpop.f32.mrf.mxu0
    %v828 = vadd.f32 1e-16, %v827
    %v829 = vpop.f32.mrf.mxu0
    %830 = vmatprep.mubr.f32.mxu0 0.0
    %831 = vmatmul.mubr.f32.gmra.mxu0 %v759
    %v832 = vpop.f32.mrf.mxu0
    %v833 = vadd.f32 1e-16, %v832
    %v834 = vpop.f32.mrf.mxu0
    %835 = vdwg.mxu0
    %v836 = vrcp.pop %v828
    %v837 = vrcp.pop %v833
    %v838 = vmul.f32 %v745, %v836
    %v839 = vmul.f32 %v748, %v837
    %842 = vrot.lane.b32.xlu0 %v168, 92
    %v843 = vpop.permute.xlu0 %842
    %844 = vrot.lane.b32.xlu0 %v173, 92
    %v845 = vpop.permute.xlu0 %844
    %v848 = vadd.f32 %v838, %v843
    %v849 = vadd.f32 %v839, %v845
    %v851 = vlaneseq
    %v852 = vshrl.u32 %v851, 7
    %v853 = vsub.s32 0, %v852
    %v854 = vrot.slane %v93, %v853
    %v856 = vadd.f32 %v848, %v854
    %v857 = vadd.f32 %v849, %v854
    %vm858 = vcmp.gt.f32.partialorder %v856, 0.0
    %vm859 = vcmp.gt.f32.partialorder %v857, 0.0
    %v860 = vmin.f32 %v856, 0.0
    %v861 = vmin.f32 %v857, 0.0
    %v862 = vmul.f32 %v860, 1.442695
    %v863 = vpow.pop %v862
    %v864 = vmul.f32 %v861, 1.442695
    %v865 = vpow.pop %v864
    %v866 = vsub.f32 %v863, 1.0
    %v867 = vsub.f32 %v865, 1.0
    %v868 = vsel %vm858, %v856, %v866
    %v869 = vsel %vm859, %v857, %v867
    %v870 = vld [vmem:[%s11] sm:$0xff]
    %v871 = vld [vmem:[%s11 + $0x8] sm:$0xff]
    %v872 = vld [vmem:[%s11 + $0x10] sm:$0xff]
    %v873 = vld [vmem:[%s11 + $0x18] sm:$0xff]
    %v874 = vld [vmem:[%s11 + $0x20] sm:$0xff]
    %v875 = vld [vmem:[%s11 + $0x28] sm:$0xff]
    %v876 = vld [vmem:[%s11 + $0x30] sm:$0xff]
    %v877 = vld [vmem:[%s11 + $0x38] sm:$0xff]
    %v878 = vld [vmem:[%s12] sm:$0x1]
    %v879 = vld [vmem:[%s13] sm:$0xff]
    %v880 = vld [vmem:[%s13 + $0x8] sm:$0xff]
    %v881 = vld [vmem:[%s13 + $0x10] sm:$0xff]
    %v882 = vld [vmem:[%s13 + $0x18] sm:$0xff]
    %v883 = vld [vmem:[%s13 + $0x20] sm:$0xff]
    %v884 = vld [vmem:[%s13 + $0x28] sm:$0xff]
    %v885 = vld [vmem:[%s13 + $0x30] sm:$0xff]
    %v886 = vld [vmem:[%s13 + $0x38] sm:$0xff]
    %v887 = vld [vmem:[%s13 + $0x40] sm:$0x3]
    %v888 = vld [vmem:[%s14] sm:$0x3]
    %v889 = vld [vmem:[%s15] sm:$0x1]
    %v890 = vld [vmem:[%s16] sm:$0x1]
    %v891 = vld [vmem:[%s17] sm:$0xff]
    %v892 = vld [vmem:[%s17 + $0x8] sm:$0xff]
    %v893 = vld [vmem:[%s17 + $0x10] sm:$0xff]
    %v894 = vld [vmem:[%s17 + $0x18] sm:$0xff]
    %v895 = vld [vmem:[%s17 + $0x20] sm:$0xff]
    %v896 = vld [vmem:[%s17 + $0x28] sm:$0xff]
    %v897 = vld [vmem:[%s17 + $0x30] sm:$0xff]
    %v898 = vld [vmem:[%s17 + $0x38] sm:$0xff]
    %vm899 = vcmask 261120
    %v901 = vsel %vm899, %v868, 0
    %v904 = vsel %vm899, %v869, 0
    %906 = vmatprep.subr.mxu0 0.0
    %907 = vmatpush1.msra.mxu0 0.0
    %908 = vmatprep.subr.mxu0 0.0
    %909 = vmatpush1.msra.mxu0 0.0
    %910 = vmatprep.subr.mxu0 0.0
    %911 = vmatpush1.msra.mxu0 0.0
    %912 = vmatprep.subr.mxu0 0.0
    %913 = vmatpush1.msra.mxu0 0.0
    %914 = vmatprep.subr.mxu0 0.0
    %915 = vmatpush1.msra.mxu0 0.0
    %916 = vmatprep.subr.mxu0 0.0
    %917 = vmatpush1.msra.mxu0 0.0
    %918 = vmatprep.subr.mxu0 0.0
    %919 = vmatpush1.msra.mxu0 0.0
    %920 = vmatprep.subr.mxu0 0.0
    %921 = vmatpush1.msra.mxu0 0.0
    %922 = vmatprep.subr.mxu0 0.0
    %923 = vmatpush1.msra.mxu0 0.0
    %924 = vmatprep.subr.mxu0 0.0
    %925 = vmatpush1.msra.mxu0 0.0
    %926 = vmatprep.subr.mxu0 0.0
    %927 = vmatpush1.msra.mxu0 0.0
    %928 = vmatprep.subr.mxu0 0.0
    %929 = vmatpush1.msra.mxu0 0.0
    %930 = vmatprep.subr.mxu0 %v877
    %931 = vmatpush1.msra.mxu0 %v876
    %932 = vmatprep.subr.mxu0 %v875
    %933 = vmatpush1.msra.mxu0 %v874
    %934 = vmatprep.subr.mxu0 %v873
    %935 = vmatpush1.msra.mxu0 %v872
    %936 = vmatprep.subr.mxu0 %v871
    %937 = vmatpush1.msra.mxu0 %v870
    %938 = vmatprep.subr.mxu0 0.0
    %939 = vmatpush2.msra.mxu0 0.0
    %940 = vmatprep.subr.mxu0 0.0
    %941 = vmatpush2.msra.mxu0 0.0
    %942 = vmatprep.subr.mxu0 0.0
    %943 = vmatpush2.msra.mxu0 0.0
    %944 = vmatprep.subr.mxu0 0.0
    %945 = vmatpush2.msra.mxu0 0.0
    %946 = vmatprep.subr.mxu0 0.0
    %947 = vmatpush2.msra.mxu0 0.0
    %948 = vmatprep.subr.mxu0 0.0
    %949 = vmatpush2.msra.mxu0 0.0
    %950 = vmatprep.subr.mxu0 0.0
    %951 = vmatpush2.msra.mxu0 0.0
    %952 = vmatprep.subr.mxu0 0.0
    %953 = vmatpush2.msra.mxu0 0.0
    %954 = vmatprep.subr.mxu0 0.0
    %955 = vmatpush2.msra.mxu0 0.0
    %956 = vmatprep.subr.mxu0 0.0
    %957 = vmatpush2.msra.mxu0 0.0
    %958 = vmatprep.subr.mxu0 0.0
    %959 = vmatpush2.msra.mxu0 0.0
    %960 = vmatprep.subr.mxu0 0.0
    %961 = vmatpush2.msra.mxu0 0.0
    %962 = vmatprep.subr.mxu0 0.0
    %963 = vmatpush2.msra.mxu0 0.0
    %964 = vmatprep.subr.mxu0 0.0
    %965 = vmatpush2.msra.mxu0 0.0
    %966 = vmatprep.subr.mxu0 0.0
    %967 = vmatpush2.msra.mxu0 0.0
    %968 = vmatprep.subr.mxu0 0.0
    %969 = vmatpush2.msra.mxu0 0.0
    %970 = vmatprep.mubr.f32.mxu0 0.0
    %971 = vmatmul.mubr.f32.gmra.mxu0 %v901
    %v972 = vpop.f32.mrf.mxu0
    %v973 = vadd.f32 0.0, %v972
    %v974 = vpop.f32.mrf.mxu0
    %v975 = vadd.f32 0.0, %v974
    %976 = vmatprep.mubr.f32.mxu0 0.0
    %977 = vmatmul.mubr.f32.gmra.mxu0 %v904
    %v978 = vpop.f32.mrf.mxu0
    %v979 = vadd.f32 0.0, %v978
    %v980 = vpop.f32.mrf.mxu0
    %v981 = vadd.f32 0.0, %v980
    %982 = vdwg.mxu0
    %v984 = vlaneseq
    %v985 = vshrl.u32 %v984, 7
    %v986 = vsub.s32 0, %v985
    %v987 = vrot.slane %v878, %v986
    %v989 = vadd.f32 %v973, %v987
    %v990 = vadd.f32 %v979, %v987
    %v991 = vpack.c.bf16 %v990, %v989
    %992 = vmatprep.subr.bf16.mxu0 0
    %993 = vmatpush1.bf16.msra.mxu0 0
    %994 = vmatprep.subr.bf16.mxu0 0
    %995 = vmatpush1.bf16.msra.mxu0 0
    %996 = vmatprep.subr.bf16.mxu0 0
    %997 = vmatpush1.bf16.msra.mxu0 0
    %998 = vmatprep.subr.bf16.mxu0 0
    %999 = vmatpush1.bf16.msra.mxu0 0
    %1000 = vmatprep.subr.bf16.mxu0 0
    %1001 = vmatpush1.bf16.msra.mxu0 0
    %1002 = vmatprep.subr.bf16.mxu0 0
    %1003 = vmatpush1.bf16.msra.mxu0 0
    %1004 = vmatprep.subr.bf16.mxu0 0
    %1005 = vmatpush1.bf16.msra.mxu0 0
    %1006 = vmatprep.subr.bf16.mxu0 0
    %1007 = vmatpush1.bf16.msra.mxu0 %v991
    %1008 = vmatprep.subr.bf16.mxu0 0
    %1009 = vmatpush2.bf16.msra.mxu0 0
    %1010 = vmatprep.subr.bf16.mxu0 0
    %1011 = vmatpush2.bf16.msra.mxu0 0
    %1012 = vmatprep.subr.bf16.mxu0 0
    %1013 = vmatpush2.bf16.msra.mxu0 0
    %1014 = vmatprep.subr.bf16.mxu0 0
    %1015 = vmatpush2.bf16.msra.mxu0 0
    %1016 = vmatprep.subr.bf16.mxu0 0
    %1017 = vmatpush2.bf16.msra.mxu0 0
    %1018 = vmatprep.subr.bf16.mxu0 0
    %1019 = vmatpush2.bf16.msra.mxu0 0
    %1020 = vmatprep.subr.bf16.mxu0 0
    %1021 = vmatpush2.bf16.msra.mxu0 0
    %1022 = vmatprep.subr.bf16.mxu0 0
    %1023 = vmatpush2.bf16.msra.mxu0 0
    %1024 = vmatprep.mubr.bf16.mxu0 0
    %1025 = vmatmul.mubr.bf16.gmra.mxu0 %v201
    %v1026 = vpop.f32.mrf.mxu0
    %v1027 = vadd.f32 0.0, %v1026
    %v1028 = vpop.f32.mrf.mxu0
    %v1029 = vpop.f32.mrf.mxu0
    %v1030 = vadd.f32 0.0, %v1029
    %v1031 = vpop.f32.mrf.mxu0
    %1032 = vmatprep.mubr.bf16.mxu0 0
    %1033 = vmatmul.mubr.bf16.gmra.mxu0 %v204
    %v1034 = vpop.f32.mrf.mxu0
    %v1035 = vadd.f32 0.0, %v1034
    %v1036 = vpop.f32.mrf.mxu0
    %v1037 = vpop.f32.mrf.mxu0
    %v1038 = vadd.f32 0.0, %v1037
    %v1039 = vpop.f32.mrf.mxu0
    %1040 = vmatprep.mubr.bf16.mxu0 0
    %1041 = vmatmul.mubr.bf16.gmra.mxu0 %v207
    %v1042 = vpop.f32.mrf.mxu0
    %v1043 = vadd.f32 0.0, %v1042
    %v1044 = vpop.f32.mrf.mxu0
    %v1045 = vpop.f32.mrf.mxu0
    %v1046 = vadd.f32 0.0, %v1045
    %v1047 = vpop.f32.mrf.mxu0
    %1048 = vdwg.mxu0
    %v1049 = vpack.c.bf16 %v979, %v973
    %1051 = vrot.lane.b32.xlu0 %v1049, 62
    %v1052 = vpop.permute.xlu0 %1051
    %1054 = vmatprep.subr.bf16.mxu0 0
    %1055 = vmatpush1.bf16.msra.mxu0 0
    %1056 = vmatprep.subr.bf16.mxu0 0
    %1057 = vmatpush1.bf16.msra.mxu0 0
    %1058 = vmatprep.subr.bf16.mxu0 0
    %1059 = vmatpush1.bf16.msra.mxu0 0
    %1060 = vmatprep.subr.bf16.mxu0 0
    %1061 = vmatpush1.bf16.msra.mxu0 0
    %1062 = vmatprep.subr.bf16.mxu0 0
    %1063 = vmatpush1.bf16.msra.mxu0 0
    %1064 = vmatprep.subr.bf16.mxu0 0
    %1065 = vmatpush1.bf16.msra.mxu0 0
    %1066 = vmatprep.subr.bf16.mxu0 0
    %1067 = vmatpush1.bf16.msra.mxu0 0
    %1068 = vmatprep.subr.bf16.mxu0 0
    %1069 = vmatpush1.bf16.msra.mxu0 %v1052
    %1070 = vmatprep.subr.bf16.mxu0 0
    %1071 = vmatpush2.bf16.msra.mxu0 0
    %1072 = vmatprep.subr.bf16.mxu0 0
    %1073 = vmatpush2.bf16.msra.mxu0 0
    %1074 = vmatprep.subr.bf16.mxu0 0
    %1075 = vmatpush2.bf16.msra.mxu0 0
    %1076 = vmatprep.subr.bf16.mxu0 0
    %1077 = vmatpush2.bf16.msra.mxu0 0
    %1078 = vmatprep.subr.bf16.mxu0 0
    %1079 = vmatpush2.bf16.msra.mxu0 0
    %1080 = vmatprep.subr.bf16.mxu0 0
    %1081 = vmatpush2.bf16.msra.mxu0 0
    %1082 = vmatprep.subr.bf16.mxu0 0
    %1083 = vmatpush2.bf16.msra.mxu0 0
    %1084 = vmatprep.subr.bf16.mxu0 0
    %1085 = vmatpush2.bf16.msra.mxu0 0
    %1086 = vmatprep.mubr.bf16.mxu0 0
    %1087 = vmatmul.mubr.bf16.gmra.mxu0 %v287
    %v1088 = vpop.f32.mrf.mxu0
    %v1089 = vadd.f32 0.0, %v1088
    %v1090 = vpop.f32.mrf.mxu0
    %v1091 = vpop.f32.mrf.mxu0
    %v1092 = vadd.f32 0.0, %v1091
    %v1093 = vpop.f32.mrf.mxu0
    %1094 = vmatprep.mubr.bf16.mxu0 0
    %1095 = vmatmul.mubr.bf16.gmra.mxu0 %v290
    %v1096 = vpop.f32.mrf.mxu0
    %v1097 = vadd.f32 0.0, %v1096
    %v1098 = vpop.f32.mrf.mxu0
    %v1099 = vpop.f32.mrf.mxu0
    %v1100 = vadd.f32 0.0, %v1099
    %v1101 = vpop.f32.mrf.mxu0
    %1102 = vmatprep.mubr.bf16.mxu0 0
    %1103 = vmatmul.mubr.bf16.gmra.mxu0 %v293
    %v1104 = vpop.f32.mrf.mxu0
    %v1105 = vadd.f32 0.0, %v1104
    %v1106 = vpop.f32.mrf.mxu0
    %v1107 = vpop.f32.mrf.mxu0
    %v1108 = vadd.f32 0.0, %v1107
    %v1109 = vpop.f32.mrf.mxu0
    %1110 = vdwg.mxu0
    %vm1111 = vcmask 539648
    %v1113 = vsel %vm1111, %v1027, 0
    %v1116 = vsel %vm1111, %v1030, 0
    %v1119 = vsel %vm1111, %v1035, 0
    %v1122 = vsel %vm1111, %v1038, 0
    %v1125 = vsel %vm1111, %v1043, 0
    %v1128 = vsel %vm1111, %v1046, 0
    %v1131 = vsel %vm371, %v887, 0
    %1133 = vmatprep.subr.mxu0 0.0
    %1134 = vmatpush1.msra.mxu0 0.0
    %1135 = vmatprep.subr.mxu0 0.0
    %1136 = vmatpush1.msra.mxu0 0.0
    %1137 = vmatprep.subr.mxu0 0.0
    %1138 = vmatpush1.msra.mxu0 0.0
    %1139 = vmatprep.subr.mxu0 0.0
    %1140 = vmatpush1.msra.mxu0 0.0
    %1141 = vmatprep.subr.mxu0 0.0
    %1142 = vmatpush1.msra.mxu0 0.0
    %1143 = vmatprep.subr.mxu0 0.0
    %1144 = vmatpush1.msra.mxu0 0.0
    %1145 = vmatprep.subr.mxu0 0.0
    %1146 = vmatpush1.msra.mxu0 0.0
    %1147 = vmatprep.subr.mxu0 0.0
    %1148 = vmatpush1.msra.mxu0 %v1131
    %1149 = vmatprep.subr.mxu0 0.0
    %1150 = vmatpush1.msra.mxu0 %v886
    %1151 = vmatprep.subr.mxu0 0.0
    %1152 = vmatpush1.msra.mxu0 %v885
    %1153 = vmatprep.subr.mxu0 0.0
    %1154 = vmatpush1.msra.mxu0 %v884
    %1155 = vmatprep.subr.mxu0 0.0
    %1156 = vmatpush1.msra.mxu0 %v883
    %1157 = vmatprep.subr.mxu0 0.0
    %1158 = vmatpush1.msra.mxu0 %v882
    %1159 = vmatprep.subr.mxu0 0.0
    %1160 = vmatpush1.msra.mxu0 %v881
    %1161 = vmatprep.subr.mxu0 0.0
    %1162 = vmatpush1.msra.mxu0 %v880
    %1163 = vmatprep.subr.mxu0 0.0
    %1164 = vmatpush1.msra.mxu0 %v879
    %1165 = vmatprep.subr.mxu0 0.0
    %1166 = vmatpush2.msra.mxu0 0.0
    %1167 = vmatprep.subr.mxu0 0.0
    %1168 = vmatpush2.msra.mxu0 0.0
    %1169 = vmatprep.subr.mxu0 0.0
    %1170 = vmatpush2.msra.mxu0 0.0
    %1171 = vmatprep.subr.mxu0 0.0
    %1172 = vmatpush2.msra.mxu0 0.0
    %1173 = vmatprep.subr.mxu0 0.0
    %1174 = vmatpush2.msra.mxu0 0.0
    %1175 = vmatprep.subr.mxu0 0.0
    %1176 = vmatpush2.msra.mxu0 0.0
    %1177 = vmatprep.subr.mxu0 0.0
    %1178 = vmatpush2.msra.mxu0 0.0
    %1179 = vmatprep.subr.mxu0 0.0
    %1180 = vmatpush2.msra.mxu0 0.0
    %1181 = vmatprep.subr.mxu0 0.0
    %1182 = vmatpush2.msra.mxu0 0.0
    %1183 = vmatprep.subr.mxu0 0.0
    %1184 = vmatpush2.msra.mxu0 0.0
    %1185 = vmatprep.subr.mxu0 0.0
    %1186 = vmatpush2.msra.mxu0 0.0
    %1187 = vmatprep.subr.mxu0 0.0
    %1188 = vmatpush2.msra.mxu0 0.0
    %1189 = vmatprep.subr.mxu0 0.0
    %1190 = vmatpush2.msra.mxu0 0.0
    %1191 = vmatprep.subr.mxu0 0.0
    %1192 = vmatpush2.msra.mxu0 0.0
    %1193 = vmatprep.subr.mxu0 0.0
    %1194 = vmatpush2.msra.mxu0 0.0
    %1195 = vmatprep.subr.mxu0 0.0
    %1196 = vmatpush2.msra.mxu0 0.0
    %1197 = vmatprep.mubr.f32.mxu0 0.0
    %1198 = vmatmul.mubr.f32.gmra.mxu0 %v1113
    %v1199 = vpop.f32.mrf.mxu0
    %v1200 = vadd.f32 %v1089, %v1199
    %v1201 = vpop.f32.mrf.mxu0
    %1202 = vmatprep.mubr.f32.mxu0 0.0
    %1203 = vmatmul.mubr.f32.gmra.mxu0 %v1116
    %v1204 = vpop.f32.mrf.mxu0
    %v1205 = vadd.f32 %v1092, %v1204
    %v1206 = vpop.f32.mrf.mxu0
    %1207 = vmatprep.mubr.f32.mxu0 0.0
    %1208 = vmatmul.mubr.f32.gmra.mxu0 %v1119
    %v1209 = vpop.f32.mrf.mxu0
    %v1210 = vadd.f32 %v1097, %v1209
    %v1211 = vpop.f32.mrf.mxu0
    %1212 = vmatprep.mubr.f32.mxu0 0.0
    %1213 = vmatmul.mubr.f32.gmra.mxu0 %v1122
    %v1214 = vpop.f32.mrf.mxu0
    %v1215 = vadd.f32 %v1100, %v1214
    %v1216 = vpop.f32.mrf.mxu0
    %1217 = vmatprep.mubr.f32.mxu0 0.0
    %1218 = vmatmul.mubr.f32.gmra.mxu0 %v1125
    %v1219 = vpop.f32.mrf.mxu0
    %v1220 = vadd.f32 %v1105, %v1219
    %v1221 = vpop.f32.mrf.mxu0
    %1222 = vmatprep.mubr.f32.mxu0 0.0
    %1223 = vmatmul.mubr.f32.gmra.mxu0 %v1128
    %v1224 = vpop.f32.mrf.mxu0
    %v1225 = vadd.f32 %v1108, %v1224
    %v1226 = vpop.f32.mrf.mxu0
    %1227 = vdwg.mxu0
    %v1229 = vlaneseq
    %v1230 = vshrl.u32 %v1229, 7
    %v1231 = vsub.s32 0, %v1230
    %v1232 = vrot.slane %v889, %v1231
    %v1234 = vmul.f32 %v473, %v1232
    %v1235 = vmul.f32 %v478, %v1232
    %v1236 = vmul.f32 %v483, %v1232
    %v1237 = vmul.f32 %v488, %v1232
    %v1238 = vmul.f32 %v493, %v1232
    %v1239 = vmul.f32 %v498, %v1232
    %v1240 = vadd.f32 %v1200, %v1234
    %v1241 = vadd.f32 %v1205, %v1235
    %v1242 = vadd.f32 %v1210, %v1236
    %v1243 = vadd.f32 %v1215, %v1237
    %v1244 = vadd.f32 %v1220, %v1238
    %v1245 = vadd.f32 %v1225, %v1239
    %vm1246 = vcmp.gt.f32.partialorder %v1240, 0.0
    %vm1247 = vcmp.gt.f32.partialorder %v1241, 0.0
    %vm1248 = vcmp.gt.f32.partialorder %v1242, 0.0
    %vm1249 = vcmp.gt.f32.partialorder %v1243, 0.0
    %vm1250 = vcmp.gt.f32.partialorder %v1244, 0.0
    %vm1251 = vcmp.gt.f32.partialorder %v1245, 0.0
    %v1252 = vmul.f32 %v1240, 0.2
    %v1253 = vmul.f32 %v1241, 0.2
    %v1254 = vmul.f32 %v1242, 0.2
    %v1255 = vmul.f32 %v1243, 0.2
    %v1256 = vmul.f32 %v1244, 0.2
    %v1257 = vmul.f32 %v1245, 0.2
    %v1258 = vsel %vm1246, %v1240, %v1252
    %v1259 = vsel %vm1247, %v1241, %v1253
    %v1260 = vsel %vm1248, %v1242, %v1254
    %v1261 = vsel %vm1249, %v1243, %v1255
    %v1262 = vsel %vm1250, %v1244, %v1256
    %v1263 = vsel %vm1251, %v1245, %v1257
    %v1264 = vsel %vm536, %v1258, -inf
    %v1265 = vsel %vm536, %v1259, -inf
    %v1266 = vsel %vm536, %v1260, -inf
    %v1267 = vsel %vm536, %v1261, -inf
    %v1268 = vsel %vm536, %v1262, -inf
    %v1269 = vmax.f32 %v1264, %v1268
    %v1270 = vsel %vm536, %v1263, -inf
    %v1271 = vmax.f32 %v1265, %v1270
    %v1272 = vmax.f32 %v1269, %v1271
    %v1273 = vmax.f32 %v1266, %v1267
    %v1274 = vmax.f32 %v1272, %v1273
    %1275 = vmax.xlane.f32.xlu0 %v1274
    %v1276 = vpop.xlane.xlu0 %1275
    %v1277 = vrot.slane %v1276, 4
    %v1278 = vmax.f32 %v1276, %v1277
    %v1279 = vrot.slane %v1278, 2
    %v1280 = vmax.f32 %v1278, %v1279
    %v1281 = vrot.slane %v1280, 1
    %v1282 = vmax.f32 %v1280, %v1281
    %s1283 = vtos %v1282
    %v1284 = vstv %s1283
    %v1285 = vsub.f32 %v1258, %v1284
    %v1286 = vsub.f32 %v1259, %v1284
    %v1287 = vsub.f32 %v1260, %v1284
    %v1288 = vsub.f32 %v1261, %v1284
    %v1289 = vsub.f32 %v1262, %v1284
    %v1290 = vsub.f32 %v1263, %v1284
    %v1291 = vmul.f32 %v1285, 1.442695
    %v1292 = vpow.pop %v1291
    %v1293 = vmul.f32 %v1286, 1.442695
    %v1294 = vpow.pop %v1293
    %v1295 = vmul.f32 %v1287, 1.442695
    %v1296 = vpow.pop %v1295
    %v1297 = vmul.f32 %v1288, 1.442695
    %v1298 = vpow.pop %v1297
    %v1299 = vmul.f32 %v1289, 1.442695
    %v1300 = vpow.pop %v1299
    %v1301 = vmul.f32 %v1290, 1.442695
    %v1302 = vpow.pop %v1301
    %v1304 = vsel %vm536, %v1292, 0
    %v1307 = vsel %vm536, %v1294, 0
    %v1310 = vsel %vm536, %v1296, 0
    %v1313 = vsel %vm536, %v1298, 0
    %v1316 = vsel %vm536, %v1300, 0
    %v1319 = vsel %vm536, %v1302, 0
    %v1322 = vsel %vm371, %v888, 0
    %1324 = vmatprep.subr.mxu0 0.0
    %1325 = vmatpush1.msra.mxu0 0.0
    %1326 = vmatprep.subr.mxu0 0.0
    %1327 = vmatpush1.msra.mxu0 0.0
    %1328 = vmatprep.subr.mxu0 0.0
    %1329 = vmatpush1.msra.mxu0 0.0
    %1330 = vmatprep.subr.mxu0 0.0
    %1331 = vmatpush1.msra.mxu0 0.0
    %1332 = vmatprep.subr.mxu0 0.0
    %1333 = vmatpush1.msra.mxu0 0.0
    %1334 = vmatprep.subr.mxu0 0.0
    %1335 = vmatpush1.msra.mxu0 0.0
    %1336 = vmatprep.subr.mxu0 0.0
    %1337 = vmatpush1.msra.mxu0 0.0
    %1338 = vmatprep.subr.mxu0 0.0
    %1339 = vmatpush1.msra.mxu0 0.0
    %1340 = vmatprep.subr.mxu0 0.0
    %1341 = vmatpush1.msra.mxu0 0.0
    %1342 = vmatprep.subr.mxu0 0.0
    %1343 = vmatpush1.msra.mxu0 0.0
    %1344 = vmatprep.subr.mxu0 0.0
    %1345 = vmatpush1.msra.mxu0 0.0
    %1346 = vmatprep.subr.mxu0 0.0
    %1347 = vmatpush1.msra.mxu0 0.0
    %1348 = vmatprep.subr.mxu0 0.0
    %1349 = vmatpush1.msra.mxu0 0.0
    %1350 = vmatprep.subr.mxu0 0.0
    %1351 = vmatpush1.msra.mxu0 0.0
    %1352 = vmatprep.subr.mxu0 0.0
    %1353 = vmatpush1.msra.mxu0 0.0
    %1354 = vmatprep.subr.mxu0 0.0
    %1355 = vmatpush1.msra.mxu0 %v1322
    %1356 = vmatprep.subr.mxu0 0.0
    %1357 = vmatpush2.msra.mxu0 0.0
    %1358 = vmatprep.subr.mxu0 0.0
    %1359 = vmatpush2.msra.mxu0 0.0
    %1360 = vmatprep.subr.mxu0 0.0
    %1361 = vmatpush2.msra.mxu0 0.0
    %1362 = vmatprep.subr.mxu0 0.0
    %1363 = vmatpush2.msra.mxu0 0.0
    %1364 = vmatprep.subr.mxu0 0.0
    %1365 = vmatpush2.msra.mxu0 0.0
    %1366 = vmatprep.subr.mxu0 0.0
    %1367 = vmatpush2.msra.mxu0 0.0
    %1368 = vmatprep.subr.mxu0 0.0
    %1369 = vmatpush2.msra.mxu0 0.0
    %1370 = vmatprep.subr.mxu0 0.0
    %1371 = vmatpush2.msra.mxu0 0.0
    %1372 = vmatprep.subr.mxu0 0.0
    %1373 = vmatpush2.msra.mxu0 0.0
    %1374 = vmatprep.subr.mxu0 0.0
    %1375 = vmatpush2.msra.mxu0 0.0
    %1376 = vmatprep.subr.mxu0 0.0
    %1377 = vmatpush2.msra.mxu0 0.0
    %1378 = vmatprep.subr.mxu0 0.0
    %1379 = vmatpush2.msra.mxu0 0.0
    %1380 = vmatprep.subr.mxu0 0.0
    %1381 = vmatpush2.msra.mxu0 0.0
    %1382 = vmatprep.subr.mxu0 0.0
    %1383 = vmatpush2.msra.mxu0 0.0
    %1384 = vmatprep.subr.mxu0 0.0
    %1385 = vmatpush2.msra.mxu0 0.0
    %1386 = vmatprep.subr.mxu0 0.0
    %1387 = vmatpush2.msra.mxu0 0.0
    %1388 = vmatprep.mubr.f32.mxu0 0.0
    %1389 = vmatmul.mubr.f32.gmra.mxu0 %v1304
    %v1390 = vpop.f32.mrf.mxu0
    %v1391 = vadd.f32 0.0, %v1390
    %v1392 = vpop.f32.mrf.mxu0
    %1393 = vmatprep.mubr.f32.mxu0 0.0
    %1394 = vmatmul.mubr.f32.gmra.mxu0 %v1307
    %v1395 = vpop.f32.mrf.mxu0
    %v1396 = vadd.f32 0.0, %v1395
    %v1397 = vpop.f32.mrf.mxu0
    %1398 = vmatprep.mubr.f32.mxu0 0.0
    %1399 = vmatmul.mubr.f32.gmra.mxu0 %v1310
    %v1400 = vpop.f32.mrf.mxu0
    %v1401 = vadd.f32 0.0, %v1400
    %v1402 = vpop.f32.mrf.mxu0
    %1403 = vmatprep.mubr.f32.mxu0 0.0
    %1404 = vmatmul.mubr.f32.gmra.mxu0 %v1313
    %v1405 = vpop.f32.mrf.mxu0
    %v1406 = vadd.f32 0.0, %v1405
    %v1407 = vpop.f32.mrf.mxu0
    %1408 = vmatprep.mubr.f32.mxu0 0.0
    %1409 = vmatmul.mubr.f32.gmra.mxu0 %v1316
    %v1410 = vpop.f32.mrf.mxu0
    %v1411 = vadd.f32 0.0, %v1410
    %v1412 = vpop.f32.mrf.mxu0
    %1413 = vmatprep.mubr.f32.mxu0 0.0
    %1414 = vmatmul.mubr.f32.gmra.mxu0 %v1319
    %v1415 = vpop.f32.mrf.mxu0
    %v1416 = vadd.f32 0.0, %v1415
    %v1417 = vpop.f32.mrf.mxu0
    %1418 = vdwg.mxu0
    %v1419 = vmul.f32 %v1027, %v1391
    %v1420 = vmul.f32 %v1030, %v1396
    %v1421 = vmul.f32 %v1035, %v1401
    %v1422 = vmul.f32 %v1038, %v1406
    %v1423 = vmul.f32 %v1043, %v1411
    %v1424 = vmul.f32 %v1046, %v1416
    %v1425 = vpack.c.bf16 %v1420, %v1419
    %v1426 = vpack.c.bf16 %v1422, %v1421
    %v1427 = vpack.c.bf16 %v1424, %v1423
    %1428 = vmatprep.subr.bf16.mxu0 0
    %1429 = vmatpush1.bf16.msra.mxu0 0
    %1430 = vmatprep.subr.bf16.mxu0 0
    %1431 = vmatpush1.bf16.msra.mxu0 0
    %1432 = vmatprep.subr.bf16.mxu0 0
    %1433 = vmatpush1.bf16.msra.mxu0 0
    %1434 = vmatprep.subr.bf16.mxu0 0
    %1435 = vmatpush1.bf16.msra.mxu0 0
    %1436 = vmatprep.subr.bf16.mxu0 0
    %1437 = vmatpush1.bf16.msra.mxu0 0
    %1438 = vmatprep.subr.bf16.mxu0 0
    %1439 = vmatpush1.bf16.msra.mxu0 %v1427
    %1440 = vmatprep.subr.bf16.mxu0 0
    %1441 = vmatpush1.bf16.msra.mxu0 %v1426
    %1442 = vmatprep.subr.bf16.mxu0 0
    %1443 = vmatpush1.bf16.msra.mxu0 %v1425
    %1444 = vmatprep.subr.bf16.mxu0 0
    %1445 = vmatpush2.bf16.msra.mxu0 0
    %1446 = vmatprep.subr.bf16.mxu0 0
    %1447 = vmatpush2.bf16.msra.mxu0 0
    %1448 = vmatprep.subr.bf16.mxu0 0
    %1449 = vmatpush2.bf16.msra.mxu0 0
    %1450 = vmatprep.subr.bf16.mxu0 0
    %1451 = vmatpush2.bf16.msra.mxu0 0
    %1452 = vmatprep.subr.bf16.mxu0 0
    %1453 = vmatpush2.bf16.msra.mxu0 0
    %1454 = vmatprep.subr.bf16.mxu0 0
    %1455 = vmatpush2.bf16.msra.mxu0 0
    %1456 = vmatprep.subr.bf16.mxu0 0
    %1457 = vmatpush2.bf16.msra.mxu0 0
    %1458 = vmatprep.subr.bf16.mxu0 0
    %1459 = vmatpush2.bf16.msra.mxu0 0
    %1460 = vmatprep.mubr.bf16.mxu0 0
    %1461 = vmatmul.mubr.bf16.gmra.mxu0 %v708
    %v1462 = vpop.f32.mrf.mxu0
    %v1463 = vadd.f32 0.0, %v1462
    %v1464 = vpop.f32.mrf.mxu0
    %v1465 = vpop.f32.mrf.mxu0
    %v1466 = vadd.f32 0.0, %v1465
    %v1467 = vpop.f32.mrf.mxu0
    %1468 = vdwg.mxu0
    %1471 = vrot.lane.b32.xlu0 %v1463, 64
    %v1472 = vpop.permute.xlu0 %1471
    %1473 = vrot.lane.b32.xlu0 %v1466, 64
    %v1474 = vpop.permute.xlu0 %1473
    %v1475 = vsel %vm536, %v1472, 0
    %v1477 = vsel %vm536, %v1474, 0
    %1479 = vmatprep.subr.mxu0 0.0
    %1480 = vmatpush1.msra.mxu0 0.0
    %1481 = vmatprep.subr.mxu0 0.0
    %1482 = vmatpush1.msra.mxu0 0.0
    %1483 = vmatprep.subr.mxu0 0.0
    %1484 = vmatpush1.msra.mxu0 0.0
    %1485 = vmatprep.subr.mxu0 0.0
    %1486 = vmatpush1.msra.mxu0 0.0
    %1487 = vmatprep.subr.mxu0 0.0
    %1488 = vmatpush1.msra.mxu0 0.0
    %1489 = vmatprep.subr.mxu0 0.0
    %1490 = vmatpush1.msra.mxu0 0.0
    %1491 = vmatprep.subr.mxu0 0.0
    %1492 = vmatpush1.msra.mxu0 0.0
    %1493 = vmatprep.subr.mxu0 0.0
    %1494 = vmatpush1.msra.mxu0 0.0
    %1495 = vmatprep.subr.mxu0 0.0
    %1496 = vmatpush1.msra.mxu0 0.0
    %1497 = vmatprep.subr.mxu0 0.0
    %1498 = vmatpush1.msra.mxu0 0.0
    %1499 = vmatprep.subr.mxu0 0.0
    %1500 = vmatpush1.msra.mxu0 0.0
    %1501 = vmatprep.subr.mxu0 0.0
    %1502 = vmatpush1.msra.mxu0 0.0
    %1503 = vmatprep.subr.mxu0 0.0
    %1504 = vmatpush1.msra.mxu0 0.0
    %1505 = vmatprep.subr.mxu0 0.0
    %1506 = vmatpush1.msra.mxu0 0.0
    %1507 = vmatprep.subr.mxu0 0.0
    %1508 = vmatpush1.msra.mxu0 0.0
    %1509 = vmatprep.subr.mxu0 0.0
    %1510 = vmatpush1.msra.mxu0 %v1322
    %1511 = vmatprep.subr.mxu0 0.0
    %1512 = vmatpush2.msra.mxu0 0.0
    %1513 = vmatprep.subr.mxu0 0.0
    %1514 = vmatpush2.msra.mxu0 0.0
    %1515 = vmatprep.subr.mxu0 0.0
    %1516 = vmatpush2.msra.mxu0 0.0
    %1517 = vmatprep.subr.mxu0 0.0
    %1518 = vmatpush2.msra.mxu0 0.0
    %1519 = vmatprep.subr.mxu0 0.0
    %1520 = vmatpush2.msra.mxu0 0.0
    %1521 = vmatprep.subr.mxu0 0.0
    %1522 = vmatpush2.msra.mxu0 0.0
    %1523 = vmatprep.subr.mxu0 0.0
    %1524 = vmatpush2.msra.mxu0 0.0
    %1525 = vmatprep.subr.mxu0 0.0
    %1526 = vmatpush2.msra.mxu0 0.0
    %1527 = vmatprep.subr.mxu0 0.0
    %1528 = vmatpush2.msra.mxu0 0.0
    %1529 = vmatprep.subr.mxu0 0.0
    %1530 = vmatpush2.msra.mxu0 0.0
    %1531 = vmatprep.subr.mxu0 0.0
    %1532 = vmatpush2.msra.mxu0 0.0
    %1533 = vmatprep.subr.mxu0 0.0
    %1534 = vmatpush2.msra.mxu0 0.0
    %1535 = vmatprep.subr.mxu0 0.0
    %1536 = vmatpush2.msra.mxu0 0.0
    %1537 = vmatprep.subr.mxu0 0.0
    %1538 = vmatpush2.msra.mxu0 0.0
    %1539 = vmatprep.subr.mxu0 0.0
    %1540 = vmatpush2.msra.mxu0 0.0
    %1541 = vmatprep.subr.mxu0 0.0
    %1542 = vmatpush2.msra.mxu0 0.0
    %1543 = vmatprep.mubr.f32.mxu0 0.0
    %1544 = vmatmul.mubr.f32.gmra.mxu0 %v1475
    %v1545 = vpop.f32.mrf.mxu0
    %v1546 = vadd.f32 1e-16, %v1545
    %v1547 = vpop.f32.mrf.mxu0
    %1548 = vmatprep.mubr.f32.mxu0 0.0
    %1549 = vmatmul.mubr.f32.gmra.mxu0 %v1477
    %v1550 = vpop.f32.mrf.mxu0
    %v1551 = vadd.f32 1e-16, %v1550
    %v1552 = vpop.f32.mrf.mxu0
    %1553 = vdwg.mxu0
    %v1554 = vrcp.pop %v1546
    %v1555 = vrcp.pop %v1551
    %v1556 = vmul.f32 %v1463, %v1554
    %v1557 = vmul.f32 %v1466, %v1555
    %1562 = vrot.lane.b32.xlu0 %v973, 60
    %v1563 = vpop.permute.xlu0 %1562
    %1564 = vrot.lane.b32.xlu0 %v975, 60
    %v1565 = vpop.permute.xlu0 %1564
    %1566 = vrot.lane.b32.xlu0 %v979, 60
    %v1567 = vpop.permute.xlu0 %1566
    %1568 = vrot.lane.b32.xlu0 %v981, 60
    %v1569 = vpop.permute.xlu0 %1568
    %vm1570 = vcmask 490496
    %v1571 = vsel %vm1570, %v1563, %v1565
    %v1572 = vsel %vm1570, %v1567, %v1569
    %v1575 = vadd.f32 %v1556, %v1571
    %v1576 = vadd.f32 %v1557, %v1572
    %v1578 = vlaneseq
    %v1579 = vshrl.u32 %v1578, 7
    %v1580 = vsub.s32 0, %v1579
    %v1581 = vrot.slane %v890, %v1580
    %vm1583 = vcmask 523264
    %v1585 = vsel %vm1583, %v1575, 0
    %v1588 = vsel %vm1583, %v1576, 0
    %1590 = vmatprep.subr.mxu0 0.0
    %1591 = vmatpush1.msra.mxu0 0.0
    %1592 = vmatprep.subr.mxu0 0.0
    %1593 = vmatpush1.msra.mxu0 0.0
    %1594 = vmatprep.subr.mxu0 0.0
    %1595 = vmatpush1.msra.mxu0 0.0
    %1596 = vmatprep.subr.mxu0 0.0
    %1597 = vmatpush1.msra.mxu0 0.0
    %1598 = vmatprep.subr.mxu0 0.0
    %1599 = vmatpush1.msra.mxu0 0.0
    %1600 = vmatprep.subr.mxu0 0.0
    %1601 = vmatpush1.msra.mxu0 0.0
    %1602 = vmatprep.subr.mxu0 0.0
    %1603 = vmatpush1.msra.mxu0 0.0
    %1604 = vmatprep.subr.mxu0 0.0
    %1605 = vmatpush1.msra.mxu0 0.0
    %1606 = vmatprep.subr.mxu0 0.0
    %1607 = vmatpush1.msra.mxu0 %v898
    %1608 = vmatprep.subr.mxu0 0.0
    %1609 = vmatpush1.msra.mxu0 %v897
    %1610 = vmatprep.subr.mxu0 0.0
    %1611 = vmatpush1.msra.mxu0 %v896
    %1612 = vmatprep.subr.mxu0 0.0
    %1613 = vmatpush1.msra.mxu0 %v895
    %1614 = vmatprep.subr.mxu0 0.0
    %1615 = vmatpush1.msra.mxu0 %v894
    %1616 = vmatprep.subr.mxu0 0.0
    %1617 = vmatpush1.msra.mxu0 %v893
    %1618 = vmatprep.subr.mxu0 0.0
    %1619 = vmatpush1.msra.mxu0 %v892
    %1620 = vmatprep.subr.mxu0 0.0
    %1621 = vmatpush1.msra.mxu0 %v891
    %1622 = vmatprep.subr.mxu0 0.0
    %1623 = vmatpush2.msra.mxu0 0.0
    %1624 = vmatprep.subr.mxu0 0.0
    %1625 = vmatpush2.msra.mxu0 0.0
    %1626 = vmatprep.subr.mxu0 0.0
    %1627 = vmatpush2.msra.mxu0 0.0
    %1628 = vmatprep.subr.mxu0 0.0
    %1629 = vmatpush2.msra.mxu0 0.0
    %1630 = vmatprep.subr.mxu0 0.0
    %1631 = vmatpush2.msra.mxu0 0.0
    %1632 = vmatprep.subr.mxu0 0.0
    %1633 = vmatpush2.msra.mxu0 0.0
    %1634 = vmatprep.subr.mxu0 0.0
    %1635 = vmatpush2.msra.mxu0 0.0
    %1636 = vmatprep.subr.mxu0 0.0
    %1637 = vmatpush2.msra.mxu0 0.0
    %1638 = vmatprep.subr.mxu0 0.0
    %1639 = vmatpush2.msra.mxu0 0.0
    %1640 = vmatprep.subr.mxu0 0.0
    %1641 = vmatpush2.msra.mxu0 0.0
    %1642 = vmatprep.subr.mxu0 0.0
    %1643 = vmatpush2.msra.mxu0 0.0
    %1644 = vmatprep.subr.mxu0 0.0
    %1645 = vmatpush2.msra.mxu0 0.0
    %1646 = vmatprep.subr.mxu0 0.0
    %1647 = vmatpush2.msra.mxu0 0.0
    %1648 = vmatprep.subr.mxu0 0.0
    %1649 = vmatpush2.msra.mxu0 0.0
    %1650 = vmatprep.subr.mxu0 0.0
    %1651 = vmatpush2.msra.mxu0 0.0
    %1652 = vmatprep.subr.mxu0 0.0
    %1653 = vmatpush2.msra.mxu0 0.0
    %1654 = vmatprep.mubr.f32.mxu0 0.0
    %1655 = vmatmul.mubr.f32.gmra.mxu0 %v1585
    %v1656 = vpop.f32.mrf.mxu0
    %v1657 = vadd.f32 %v1581, %v1656
    %v1658 = vpop.f32.mrf.mxu0
    %1659 = vmatprep.mubr.f32.mxu0 0.0
    %1660 = vmatmul.mubr.f32.gmra.mxu0 %v1588
    %v1661 = vpop.f32.mrf.mxu0
    %v1662 = vadd.f32 %v1581, %v1661
    %v1663 = vpop.f32.mrf.mxu0
    %1664 = vdwg.mxu0
    %1665 = vst.msk [vmem:[#allocation2] sm:$0xff] %vm899, %v1657
    %1666 = vst.msk [vmem:[#allocation2 + $0x8] sm:$0xff] %vm899, %v1662
    // Predicated region
    $region74: #{tpu_custom_call.1} parent=1 // pred_check
      _
    $region75: #{tpu_custom_call.1} parent=1 // pred_check_branch
      %1668 = sbr.rel (0) target = $region77
    $region76: #{tpu_custom_call.1} parent=1 // pred_region
      %s1670 = ssub.s32 256, 256
      %1671 = vsyncadd [#allocation3], %s1670
      %s1672 = sshll.u32 [#allocation2], 4
      %s1673 = int_to_ptr.vmem [resolvable:$true] %s1672
      %1678 = dma.vmem_to_hbm [thread:$0]  %s1673, 256, %s18, [#allocation3], 128, 128, 8
    $region77: #{tpu_custom_call.1} parent=1 // pred_fallthru
      _
    // Predicated region
    $region78: #{tpu_custom_call.1} parent=1 // pred_check
      _
    $region79: #{tpu_custom_call.1} parent=1 // pred_check_branch
      %1680 = sbr.rel (0) target = $region81
    $region80: #{tpu_custom_call.1} parent=1 // pred_region
      %1681 = dma.done [#allocation3], 256
    $region81: #{tpu_custom_call.1} parent=1 // pred_fallthru
      _
    %1682 = vsyncpa [#allocation3], 1

</llo_original>
